<compile_context>
chip_gen: v7x
topology: tpu7x:2x2x1
jax: 0.10.0
libtpu: 0.0.40
codegen_flags: <defaults>
</compile_context>

<pallas_src>
import jax
import jax.numpy as jnp
from jax import lax
from jax.experimental import pallas as pl
from jax.experimental.pallas import tpu as pltpu


# ----------------------------- Pallas kernels ------------------------------ #

def conv_stats_kernel(x_ref, w_ref, y_ref, stats_ref):
    """3x3 conv on a row tile (3 accumulating MXU matmuls) + BN partial stats.

    x_ref:     (TR, W+2, 3*Cin)  bf16  row-merged padded input rows
    w_ref:     (3, 3*Cin, Coutp) bf16  per-dx weight slabs (VMEM resident)
    y_ref:     (TR, W,  Coutp)   bf16  pre-BN conv output tile
    stats_ref: (1, 2,  Coutp)    f32   [sum ; sum of squares] over this tile
    """
    TR, _, C3 = x_ref.shape
    W = y_ref.shape[1]
    Coutp = w_ref.shape[2]

    x = x_ref[...]
    y = jnp.zeros((TR * W, Coutp), jnp.float32)
    for dx in range(3):  # static unroll: 3 MXU calls, K = 3*Cin
        xs = x[:, dx:dx + W, :].reshape(TR * W, C3)
        y = y + jnp.dot(xs, w_ref[dx], preferred_element_type=jnp.float32)

    y_ref[...] = y.reshape(TR, W, Coutp).astype(y_ref.dtype)

    # single-pass streaming BN statistics (E[y], E[y^2]) in f32
    s = jnp.sum(y, axis=0, keepdims=True)
    ss = jnp.sum(y * y, axis=0, keepdims=True)
    stats_ref[...] = jnp.concatenate([s, ss], axis=0)[None]


def bn_relu_kernel(y_ref, scale_ref, shift_ref, o_ref):
    """Apply folded BN affine (y*scale + shift) + ReLU on a row tile."""
    y = y_ref[...].astype(jnp.float32) * scale_ref[...] + shift_ref[...]
    o_ref[...] = jnp.maximum(y, 0.0).astype(o_ref.dtype)


# ------------------------------ layer wrapper ------------------------------ #

def _row_tile(nh, bytes_per_row, budget=6 << 20, cap=16):
    """Largest divisor of nh (<= cap) whose double-buffered tile fits budget."""
    tr = 1
    for d in range(1, min(nh, cap) + 1):
        if nh % d == 0 and 2 * d * bytes_per_row <= budget:
            tr = d
    return tr


def conv_bn_relu_layer(x_nhwc, w_oihw, gamma, beta, *, eps=1e-5,
                       out_dtype=jnp.bfloat16):
    """One Conv2d(3x3, pad=1, bias dropped) + BatchNorm2d(train) + ReLU layer.

    x_nhwc: (N, H, W, Cin).  Returns (N, H, W, Coutp) with Coutp = Cout padded
    to a multiple of 128 (padded channels are exactly zero).
    """
    N, H, W, Cin = x_nhwc.shape
    Cout = w_oihw.shape[0]
    assert w_oihw.shape[1] == Cin
    Coutp = max(128, -(-Cout // 128) * 128)   # lane-dense output channels

    # --- glue: spatial pad + 3-row merge (3x, not 9x, im2col) ---
    xp = jnp.pad(x_nhwc, ((0, 0), (1, 1), (1, 1), (0, 0)))
    xr = jnp.concatenate([xp[:, dy:dy + H, :, :] for dy in range(3)], axis=-1)
    C3, Wp, NH = 3 * Cin, W + 2, N * H
    xr = xr.reshape(NH, Wp, C3).astype(jnp.bfloat16)

    # weights (Cout, Cin, kH, kW) -> (dx, dy*Cin+cin, Cout), zero-padded to Coutp
    wt = jnp.transpose(w_oihw, (3, 2, 1, 0)).reshape(3, C3, Cout)
    wt = jnp.pad(wt, ((0, 0), (0, 0), (0, Coutp - Cout))).astype(jnp.bfloat16)
    gamma_p = jnp.pad(gamma.astype(jnp.float32), (0, Coutp - Cout))
    beta_p = jnp.pad(beta.astype(jnp.float32), (0, Coutp - Cout))

    bytes_per_row = Wp * C3 * 2 + W * Coutp * 4
    TR = _row_tile(NH, bytes_per_row)
    grid = (NH // TR,)
    cparams = pltpu.CompilerParams(dimension_semantics=("parallel",),
                                   vmem_limit_bytes=32 * 1024 * 1024)

    # ---- pass A: conv matmul + per-tile BN partial sums ----
    y3, partials = pl.pallas_call(
        conv_stats_kernel,
        grid=grid,
        in_specs=[pl.BlockSpec((TR, Wp, C3), lambda i: (i, 0, 0)),
                  pl.BlockSpec((3, C3, Coutp), lambda i: (0, 0, 0))],
        out_specs=(pl.BlockSpec((TR, W, Coutp), lambda i: (i, 0, 0)),
                   pl.BlockSpec((1, 2, Coutp), lambda i: (i, 0, 0))),
        out_shape=(jax.ShapeDtypeStruct((NH, W, Coutp), jnp.bfloat16),
                   jax.ShapeDtypeStruct((grid[0], 2, Coutp), jnp.float32)),
        compiler_params=cparams,
    )(xr, wt)

    # ---- tiny glue: reduce partials, fold BN affine into scale/shift ----
    m = float(N * H * W)
    tot = jnp.sum(partials, axis=0)                       # (2, Coutp)
    mean = tot[0] / m
    var = jnp.maximum(tot[1] / m - mean * mean, 0.0)      # biased variance
    rstd = lax.rsqrt(var + eps)
    scale = (gamma_p * rstd).reshape(1, Coutp)
    shift = (beta_p - mean * gamma_p * rstd).reshape(1, Coutp)

    # ---- pass B: normalize + affine + ReLU ----
    out = pl.pallas_call(
        bn_relu_kernel,
        grid=grid,
        in_specs=[pl.BlockSpec((TR, W, Coutp), lambda i: (i, 0, 0)),
                  pl.BlockSpec((1, Coutp), lambda i: (0, 0)),
                  pl.BlockSpec((1, Coutp), lambda i: (0, 0))],
        out_specs=pl.BlockSpec((TR, W, Coutp), lambda i: (i, 0, 0)),
        out_shape=jax.ShapeDtypeStruct((NH, W, Coutp), out_dtype),
        compiler_params=cparams,
    )(y3, scale, shift)

    return out.reshape(N, H, W, Coutp)


# ------------------------------ full forward ------------------------------- #

def ft_generator_forward(x_nchw, params, out_channels=1):
    """FTGenerator.forward: NCHW in -> NCHW out (train-mode BatchNorm)."""
    x = jnp.transpose(x_nchw, (0, 2, 3, 1)).astype(jnp.float32)  # NCHW -> NHWC
    n_layers = len(params)
    for li, (w, _b, gamma, beta) in enumerate(params):   # conv bias unused: BN cancels it
        if w.shape[1] < x.shape[-1]:   # previous layer's channel padding -> zero-pad weight cin
            w = jnp.pad(w, ((0, 0), (0, x.shape[-1] - w.shape[1]), (0, 0), (0, 0)))
        last = li == n_layers - 1
        x = conv_bn_relu_layer(x, w, gamma, beta,
                               out_dtype=jnp.float32 if last else jnp.bfloat16)
    x = x[..., :out_channels]                            # drop lane-padding channels
    return jnp.transpose(x, (0, 3, 1, 2))                # NHWC -> NCHW


# ------------------------- params + f32 reference -------------------------- #

def init_ft_generator_params(key, in_channels=48, out_channels=1):
    """Deterministic synthetic params matching FTGenerator's layer shapes."""
    chans = [in_channels, 128, 64, out_channels]
    params = []
    for i in range(3):
        cin, cout = chans[i], chans[i + 1]
        key, k_w, k_b = jax.random.split(key, 3)
        bound = 1.0 / float(cin * 9) ** 0.5
        w = jax.random.uniform(k_w, (cout, cin, 3, 3), jnp.float32, -bound, bound)
        b = jax.random.uniform(k_b, (cout,), jnp.float32, -bound, bound)
        gamma = jnp.ones((cout,), jnp.float32)   # BN weight default
        beta = jnp.zeros((cout,), jnp.float32)   # BN bias default
        params.append((w, b, gamma, beta))
    return params


def _reference_forward(x_nchw, params, eps=1e-5):
    """Pure-JAX f32 reference (keeps the conv bias; train-mode BN cancels it)."""
    x = x_nchw
    for (w, b, gamma, beta) in params:
        y = lax.conv_general_dilated(x, w, (1, 1), ((1, 1), (1, 1)),
                                     dimension_numbers=("NCHW", "OIHW", "NCHW"))
        y = y + b.reshape(1, -1, 1, 1)
        mean = jnp.mean(y, axis=(0, 2, 3), keepdims=True)
        var = jnp.mean((y - mean) ** 2, axis=(0, 2, 3), keepdims=True)
        y = (y - mean) * lax.rsqrt(var + eps)
        y = y * gamma.reshape(1, -1, 1, 1) + beta.reshape(1, -1, 1, 1)
        x = jnp.maximum(y, 0.0)
    return x


# ----------------------------------- main ----------------------------------- #

if __name__ == "__main__":
    key = jax.random.PRNGKey(0)
    key, k_x = jax.random.split(key)

    N, C_IN, H, W_SP, C_OUT = 2, 48, 16, 16, 1     # module default in_channels=48
    x = jax.random.normal(k_x, (N, C_IN, H, W_SP), jnp.float32)
    params = init_ft_generator_params(key, in_channels=C_IN, out_channels=C_OUT)

    out = ft_generator_forward(x, params, out_channels=C_OUT)
    out = jax.block_until_ready(out)

    assert out.shape == (N, C_OUT, H, W_SP), out.shape
    assert bool(jnp.all(out >= 0.0))               # ReLU output

    ref = _reference_forward(x, params)
    assert bool(jnp.allclose(out, ref, rtol=5e-2, atol=5e-2)), \
        float(jnp.max(jnp.abs(out - ref)))

    print("KERNEL_OK")
</pallas_src>

<mosaic_0001>
module attributes {stable_mosaic.version = 11 : i64} {
  func.func @conv_stats_kernel(%arg0: i32, %arg1: memref<16x18x144xbf16, #tpu.memory_space<vmem>>, %arg2: memref<3x144x128xbf16, #tpu.memory_space<vmem>>, %arg3: memref<16x16x128xbf16, #tpu.memory_space<vmem>>, %arg4: memref<1x2x128xf32, #tpu.memory_space<vmem>>) attributes {dimension_semantics = [#tpu.dimension_semantics<parallel>], iteration_bounds = array<i64: 2>, scalar_prefetch = 0 : i64, scratch_operands = 0 : i64, tpu.core_type = #tpu.core_type<tc>, window_params = [{transform_indices = @transform_0, window_bounds = array<i64: 16, 18, 144>}, {pipeline_mode = #tpu.pipeline_mode<synchronous>, transform_indices = @transform_1, window_bounds = array<i64: 3, 144, 128>}, {transform_indices = @transform_2, window_bounds = array<i64: 16, 16, 128>}, {transform_indices = @transform_3, window_bounds = array<i64: 1, 2, 128>}]} {
    %c0 = arith.constant 0 : index
    %c0_0 = arith.constant 0 : index
    %c0_1 = arith.constant 0 : index
    %0 = vector.load %arg1[%c0, %c0_0, %c0_1] : memref<16x18x144xbf16, #tpu.memory_space<vmem>>, vector<16x18x144xbf16>
    %cst = arith.constant 0.000000e+00 : f32
    %1 = vector.broadcast %cst : f32 to vector<256x128xf32>
    %2 = vector.extract_strided_slice %0 {offsets = [0, 0, 0], sizes = [16, 16, 144], strides = [1, 1, 1]} : vector<16x18x144xbf16> to vector<16x16x144xbf16>
    %3 = vector.shape_cast %2 : vector<16x16x144xbf16> to vector<256x144xbf16>
    %c0_2 = arith.constant 0 : index
    %c0_3 = arith.constant 0 : index
    %c0_4 = arith.constant 0 : index
    %4 = vector.load %arg2[%c0_2, %c0_3, %c0_4] : memref<3x144x128xbf16, #tpu.memory_space<vmem>>, vector<1x144x128xbf16>
    %5 = vector.shape_cast %4 : vector<1x144x128xbf16> to vector<144x128xbf16>
    %cst_5 = arith.constant dense<0.000000e+00> : vector<256x128xf32>
    %6 = tpu.matmul %3, %5, %cst_5 {dimension_numbers = #tpu.dot_dimension_numbers<[1], [0], [0], [1], [0, 0, 1, 1], [], []>} : vector<256x144xbf16>, vector<144x128xbf16>, vector<256x128xf32> -> vector<256x128xf32>
    %7 = arith.addf %1, %6 : vector<256x128xf32>
    %8 = vector.extract_strided_slice %0 {offsets = [0, 1, 0], sizes = [16, 16, 144], strides = [1, 1, 1]} : vector<16x18x144xbf16> to vector<16x16x144xbf16>
    %9 = vector.shape_cast %8 : vector<16x16x144xbf16> to vector<256x144xbf16>
    %c1 = arith.constant 1 : index
    %c0_6 = arith.constant 0 : index
    %c0_7 = arith.constant 0 : index
    %10 = vector.load %arg2[%c1, %c0_6, %c0_7] : memref<3x144x128xbf16, #tpu.memory_space<vmem>>, vector<1x144x128xbf16>
    %11 = vector.shape_cast %10 : vector<1x144x128xbf16> to vector<144x128xbf16>
    %cst_8 = arith.constant dense<0.000000e+00> : vector<256x128xf32>
    %12 = tpu.matmul %9, %11, %cst_8 {dimension_numbers = #tpu.dot_dimension_numbers<[1], [0], [0], [1], [0, 0, 1, 1], [], []>} : vector<256x144xbf16>, vector<144x128xbf16>, vector<256x128xf32> -> vector<256x128xf32>
    %13 = arith.addf %7, %12 : vector<256x128xf32>
    %14 = vector.extract_strided_slice %0 {offsets = [0, 2, 0], sizes = [16, 16, 144], strides = [1, 1, 1]} : vector<16x18x144xbf16> to vector<16x16x144xbf16>
    %15 = vector.shape_cast %14 : vector<16x16x144xbf16> to vector<256x144xbf16>
    %c2 = arith.constant 2 : index
    %c0_9 = arith.constant 0 : index
    %c0_10 = arith.constant 0 : index
    %16 = vector.load %arg2[%c2, %c0_9, %c0_10] : memref<3x144x128xbf16, #tpu.memory_space<vmem>>, vector<1x144x128xbf16>
    %17 = vector.shape_cast %16 : vector<1x144x128xbf16> to vector<144x128xbf16>
    %cst_11 = arith.constant dense<0.000000e+00> : vector<256x128xf32>
    %18 = tpu.matmul %15, %17, %cst_11 {dimension_numbers = #tpu.dot_dimension_numbers<[1], [0], [0], [1], [0, 0, 1, 1], [], []>} : vector<256x144xbf16>, vector<144x128xbf16>, vector<256x128xf32> -> vector<256x128xf32>
    %19 = arith.addf %13, %18 : vector<256x128xf32>
    %20 = vector.shape_cast %19 : vector<256x128xf32> to vector<16x16x128xf32>
    %21 = arith.truncf %20 : vector<16x16x128xf32> to vector<16x16x128xbf16>
    %c0_12 = arith.constant 0 : index
    %c0_13 = arith.constant 0 : index
    %c0_14 = arith.constant 0 : index
    %22 = vector.load %arg3[%c0_12, %c0_13, %c0_14] : memref<16x16x128xbf16, #tpu.memory_space<vmem>>, vector<16x16x128xbf16>
    tpu.vector_store %arg3[%c0_12, %c0_13, %c0_14], %21 {strides = array<i32>} : memref<16x16x128xbf16, #tpu.memory_space<vmem>>, vector<16x16x128xbf16>,
    %cst_15 = arith.constant dense<0.000000e+00> : vector<128xf32>
    %23 = vector.multi_reduction <add>, %19, %cst_15 [0] : vector<256x128xf32> to vector<128xf32>
    %24 = vector.shape_cast %23 : vector<128xf32> to vector<1x128xf32>
    %25 = arith.mulf %19, %19 : vector<256x128xf32>
    %cst_16 = arith.constant dense<0.000000e+00> : vector<128xf32>
    %26 = vector.multi_reduction <add>, %25, %cst_16 [0] : vector<256x128xf32> to vector<128xf32>
    %27 = vector.shape_cast %26 : vector<128xf32> to vector<1x128xf32>
    %28 = tpu.concatenate %24, %27 in 0 : vector<1x128xf32>, vector<1x128xf32> -> vector<2x128xf32>
    %29 = vector.shape_cast %28 : vector<2x128xf32> to vector<1x2x128xf32>
    %c0_17 = arith.constant 0 : index
    %c0_18 = arith.constant 0 : index
    %c0_19 = arith.constant 0 : index
    %30 = vector.load %arg4[%c0_17, %c0_18, %c0_19] : memref<1x2x128xf32, #tpu.memory_space<vmem>>, vector<1x2x128xf32>
    tpu.vector_store %arg4[%c0_17, %c0_18, %c0_19], %29 {strides = array<i32>} : memref<1x2x128xf32, #tpu.memory_space<vmem>>, vector<1x2x128xf32>,
    return
  }
  func.func @transform_0(%arg0: i32) -> (i32, i32, i32) {
    %c0_i32 = arith.constant 0 : i32
    %c0_i32_0 = arith.constant 0 : i32
    %c0_i32_1 = arith.constant 0 : i32
    return %arg0, %c0_i32, %c0_i32_0 : i32, i32, i32
  }
  func.func @transform_1(%arg0: i32) -> (i32, i32, i32) {
    %c0_i32 = arith.constant 0 : i32
    %c0_i32_0 = arith.constant 0 : i32
    %c0_i32_1 = arith.constant 0 : i32
    %c0_i32_2 = arith.constant 0 : i32
    return %c0_i32, %c0_i32_0, %c0_i32_1 : i32, i32, i32
  }
  func.func @transform_2(%arg0: i32) -> (i32, i32, i32) {
    %c0_i32 = arith.constant 0 : i32
    %c0_i32_0 = arith.constant 0 : i32
    %c0_i32_1 = arith.constant 0 : i32
    return %arg0, %c0_i32, %c0_i32_0 : i32, i32, i32
  }
  func.func @transform_3(%arg0: i32) -> (i32, i32, i32) {
    %c0_i32 = arith.constant 0 : i32
    %c0_i32_0 = arith.constant 0 : i32
    %c0_i32_1 = arith.constant 0 : i32
    return %arg0, %c0_i32, %c0_i32_0 : i32, i32, i32
  }
}

</mosaic_0001>

<llo_original>
// kernel: tpu_custom_call.1
$region0: #{tpu_custom_call.1}
  #allocation0 [shape = 'u32[]', space=smem, size = 0x4, offset = 0x4, fixed_abs, tag = 'smem constant byte address 0x4 - core index']
  #allocation1 [shape = 'u32[144,128]{1,0:T(1,128)}', space=vmem, size = 0x12000, scoped, tag = 'internal scratch']
  %s0 = inlined_call_operand.vmem [shape: bf16[32,18,144], index: 0, kind: input, shape index: {}]
  %s1 = inlined_call_operand.vmem [shape: bf16[3,144,128], index: 1, kind: input, shape index: {}]
  %s2 = inlined_call_operand.hbm [shape: bf16[32,16,128], index: 2, kind: output, shape index: {0}]
  %s3 = inlined_call_operand.hbm [shape: f32[2,2,128], index: 3, kind: output, shape index: {1}]
  %4 = xla_tuple %s2, %s3
  %s5 = sld [smem:[#allocation0]]
  $region49: #{tpu_custom_call.1} parent=0
    _
  %s7 = ssub.s32 1, %s5
  %s8 = scalar_select 0, %s7, %s5
  $region1: #{tpu_custom_call.1} parent=0
    #allocation2 [shape = 'u8[131072]{0}', space=vmem, size = 0x20000, scoped, tag = 'output window, operand 0']
    #allocation3 [shape = 's32[2]{0}', space=sflag, size = 0x8, scoped, tag = 'scoped memory for tpu_custom_call.1']
    #allocation4 [shape = 'u8[2048]{0}', space=vmem, size = 0x800, scoped, tag = 'output window, operand 1']
    #allocation5 [shape = 's32[2]{0}', space=sflag, size = 0x8, scoped, tag = 'scoped memory for tpu_custom_call.1']
    %9 = vsyncpa [#allocation3], 0
    %s10 = scalar_lea.sflag [#allocation3], 1
    %11 = vsyncpa %s10, 0
    %12 = vsyncpa [#allocation5], 0
    %s13 = scalar_lea.sflag [#allocation5], 1
    %14 = vsyncpa %s13, 0
    loop: start=0, step=1, limit=4
    $region2: #{tpu_custom_call.1} parent=1 // loop_pre_header
      _
    $region3: #{tpu_custom_call.1} parent=1 // loop_header
      %s16 = sphi 0, %s20
      %p17 = scmp.ge.s32.totalorder %s16, 4
      %s26 = sphi 0, %s28
      %s29 = sphi 0, %s26
      %s30 = sphi 0, %s29
      %s46 = sphi 0, %s30
      %s50 = sphi 0, %s50
      %s52 = sphi 0, %s50
      %s53 = sphi 0, %s52
      %s67 = sphi 0, %s53
      %s73 = sphi 0, %s75
      %s76 = sphi 0, %s73
      %s77 = sphi 0, %s76
      %s93 = sphi 0, %s77
      %s99 = sphi 0, %s101
      %s102 = sphi 0, %s99
      %s103 = sphi 0, %s102
      %s119 = sphi 0, %s103
    $region4: #{tpu_custom_call.1} parent=1 // loop_header_branch
      %19 = sbr.rel (%p17) target = $region8
    $region5: #{tpu_custom_call.1} parent=1 // loop_body
      %s21 = ssub.s32 %s16, 1
      %s22 = ssub.s32 %s16, 2
      %s23 = sadd.s32 %s16, 1
      %s24 = ssub.s32 %s16, %s23
      %p25 = scmp.eq.s32.totalorder %s24, 0
      %s27 = sadd.s32 %s26, 1
      %s28 = scalar_select %p25, %s26, %s27
      %p31 = pneg %p25
      %p32 = scmp.eq.s32.totalorder %s16, 1
      %p33 = por %p31, %p32
      %p34 = scmp.ne.s32.totalorder %s26, %s29
      %p35 = scmp.eq.s32.totalorder %s16, 0
      %p36 = por %p34, %p35
      %p37 = scmp.ne.s32.totalorder %s26, %s29
      %p38 = scmp.eq.s32.totalorder %s21, 1
      %p39 = por %p37, %p38
      %p40 = scmp.ne.s32.totalorder %s29, %s30
      %p41 = scmp.eq.s32.totalorder %s21, 0
      %p42 = por %p40, %p41
      %p43 = scmp.ne.s32.totalorder %s29, %s30
      %p44 = scmp.eq.s32.totalorder %s22, 1
      %p45 = por %p43, %p44
      %p47 = scmp.ne.s32.totalorder %s30, %s46
      %p48 = scmp.eq.s32.totalorder %s22, 0
      %p49 = por %p47, %p48
      %s51 = sadd.s32 %s50, 1
      %p54 = scmp.eq.s32.totalorder %s16, 1
      %p55 = scmp.ne.s32.totalorder %s50, %s52
      %p56 = scmp.eq.s32.totalorder %s16, 0
      %p57 = por %p55, %p56
      %p58 = scmp.ne.s32.totalorder %s50, %s52
      %p59 = scmp.eq.s32.totalorder %s21, 1
      %p60 = por %p58, %p59
      %p61 = scmp.ne.s32.totalorder %s52, %s53
      %p62 = scmp.eq.s32.totalorder %s21, 0
      %p63 = por %p61, %p62
      %p64 = scmp.ne.s32.totalorder %s52, %s53
      %p65 = scmp.eq.s32.totalorder %s22, 1
      %p66 = por %p64, %p65
      %p68 = scmp.ne.s32.totalorder %s53, %s67
      %p69 = scmp.eq.s32.totalorder %s22, 0
      %p70 = por %p68, %p69
      %s71 = ssub.s32 %s16, %s23
      %p72 = scmp.eq.s32.totalorder %s71, 0
      %s74 = sadd.s32 %s73, 1
      %s75 = scalar_select %p72, %s73, %s74
      %p78 = pneg %p72
      %p79 = scmp.eq.s32.totalorder %s16, 1
      %p80 = por %p78, %p79
      %p81 = scmp.ne.s32.totalorder %s73, %s76
      %p82 = scmp.eq.s32.totalorder %s16, 0
      %p83 = por %p81, %p82
      %p84 = scmp.ne.s32.totalorder %s73, %s76
      %p85 = scmp.eq.s32.totalorder %s21, 1
      %p86 = por %p84, %p85
      %p87 = scmp.ne.s32.totalorder %s76, %s77
      %p88 = scmp.eq.s32.totalorder %s21, 0
      %p89 = por %p87, %p88
      %p90 = scmp.ne.s32.totalorder %s76, %s77
      %p91 = scmp.eq.s32.totalorder %s22, 1
      %p92 = por %p90, %p91
      %p94 = scmp.ne.s32.totalorder %s77, %s93
      %p95 = scmp.eq.s32.totalorder %s22, 0
      %p96 = por %p94, %p95
      %s97 = ssub.s32 %s16, %s23
      %p98 = scmp.eq.s32.totalorder %s97, 0
      %s100 = sadd.s32 %s99, 1
      %s101 = scalar_select %p98, %s99, %s100
      %p104 = pneg %p98
      %p105 = scmp.eq.s32.totalorder %s16, 1
      %p106 = por %p104, %p105
      %p107 = scmp.ne.s32.totalorder %s99, %s102
      %p108 = scmp.eq.s32.totalorder %s16, 0
      %p109 = por %p107, %p108
      %p110 = scmp.ne.s32.totalorder %s99, %s102
      %p111 = scmp.eq.s32.totalorder %s21, 1
      %p112 = por %p110, %p111
      %p113 = scmp.ne.s32.totalorder %s102, %s103
      %p114 = scmp.eq.s32.totalorder %s21, 0
      %p115 = por %p113, %p114
      %p116 = scmp.ne.s32.totalorder %s102, %s103
      %p117 = scmp.eq.s32.totalorder %s22, 1
      %p118 = por %p116, %p117
      %p120 = scmp.ne.s32.totalorder %s103, %s119
      %p121 = scmp.eq.s32.totalorder %s22, 0
      %p122 = por %p120, %p121
      %p123 = scmp.le.s32.totalorder 1, %s16
      %p124 = scmp.lt.s32.totalorder %s16, 3
      %p125 = pnand %p123, %p124
      %p126 = pneg %p125
      // Predicated region
      $region9: #{tpu_custom_call.1} parent=5 // pred_check
        _
      $region10: #{tpu_custom_call.1} parent=5 // pred_check_branch
        %128 = sbr.rel (%p125) target = $region12
      $region11: #{tpu_custom_call.1} parent=5 // pred_region
        %s129 = ssub.s32 %s16, 1
        // Predicated region
        $region13: #{tpu_custom_call.1} parent=11 // pred_check
          %p130 = pneg %p63
        $region14: #{tpu_custom_call.1} parent=11 // pred_check_branch
          %132 = sbr.rel (%p130) target = $region16
        $region15: #{tpu_custom_call.1} parent=11 // pred_region
          _
        $region16: #{tpu_custom_call.1} parent=11 // pred_fallthru
          _
      $region12: #{tpu_custom_call.1} parent=5 // pred_fallthru
        _
      %p133 = scmp.lt.s32.totalorder %s16, 2
      // Predicated region
      $region17: #{tpu_custom_call.1} parent=5 // pred_check
        %p134 = pneg %p133
      $region18: #{tpu_custom_call.1} parent=5 // pred_check_branch
        %136 = sbr.rel (%p134) target = $region20
      $region19: #{tpu_custom_call.1} parent=5 // pred_region
        // Predicated region
        $region21: #{tpu_custom_call.1} parent=19 // pred_check
          %p137 = pneg %p36
        $region22: #{tpu_custom_call.1} parent=19 // pred_check_branch
          %139 = sbr.rel (%p137) target = $region24
        $region23: #{tpu_custom_call.1} parent=19 // pred_region
          %s140 = smul.u32 16, %s16
          %p141 = scmp.lt.s32.totalorder %s140, 31
          %s142 = scalar_select %p141, %s140, 31
          %s143 = smul.addr %s142, 6
          %s144 = smul.addr %s143, 4
          %s145 = scalar_lea.vmem %s0, %s144
          %s146 = smul.u32 16, %s16
        $region24: #{tpu_custom_call.1} parent=19 // pred_fallthru
          _
      $region20: #{tpu_custom_call.1} parent=5 // pred_fallthru
        _
      %p147 = scmp.le.s32.totalorder 1, %s16
      %p148 = scmp.lt.s32.totalorder %s16, 3
      %p149 = pnand %p147, %p148
      %p150 = pneg %p149
      // Predicated region
      $region25: #{tpu_custom_call.1} parent=5 // pred_check
        _
      $region26: #{tpu_custom_call.1} parent=5 // pred_check_branch
        %152 = sbr.rel (%p149) target = $region28
      $region27: #{tpu_custom_call.1} parent=5 // pred_region
        %s153 = ssub.s32 %s16, 1
        %s154 = smul.u32 16, %s21
        %p155 = scmp.lt.s32.totalorder %s154, 31
        %s156 = scalar_select %p155, %s154, 31
        %s157 = smul.addr %s156, 6
        %s158 = smul.addr %s157, 4
        %s159 = scalar_lea.vmem %s0, %s158
        %p160 = pneg %p42
        %p161 = pneg %p39
        %p162 = pneg %p63
        %p163 = pneg %p60
        %p164 = pneg %p89
        %p165 = pneg %p86
        %s166 = sand.u32 %s76, 1
        %s167 = scalar_lea.sflag [#allocation3], %s166
        %s168 = sand.u32 %s76, 1
        %s169 = smul.addr %s168, 128
        %s170 = scalar_lea.vmem [#allocation2], %s169
        %p171 = pneg %p115
        %p172 = pneg %p112
        %s173 = sand.u32 %s102, 1
        %s174 = scalar_lea.sflag [#allocation5], %s173
        %s175 = sand.u32 %s102, 1
        %s176 = smul.addr %s175, 2
        %s177 = scalar_lea.vmem [#allocation4], %s176
        %s178 = smul.u32 16, %s21
        %p179 = scmp.lt.s32.totalorder %s178, 31
        %s180 = scalar_select %p179, %s178, 31
        %s181 = smul.addr %s180, 6
        %s182 = smul.addr %s181, 4
        %s183 = scalar_lea.vmem %s0, %s182
        %s184 = smul.u32 16, %s21
        %s185 = smul.u32 16, %s21
        %v187 = vld [vmem:[%s183] sm:$0xff]
        %v188 = vld [vmem:[%s183 + $0x8] sm:$0xff]
        %v189 = vld [vmem:[%s183 + $0x10] sm:$0x11]
        %v190 = vld [vmem:[%s183 + $0x18] sm:$0xff]
        %v191 = vld [vmem:[%s183 + $0x20] sm:$0xff]
        %v192 = vld [vmem:[%s183 + $0x28] sm:$0x11]
        %v193 = vld [vmem:[%s183 + $0x30] sm:$0xff]
        %v194 = vld [vmem:[%s183 + $0x38] sm:$0xff]
        %v195 = vld [vmem:[%s183 + $0x40] sm:$0x11]
        %v196 = vld [vmem:[%s183 + $0x48] sm:$0xff]
        %v197 = vld [vmem:[%s183 + $0x50] sm:$0xff]
        %v198 = vld [vmem:[%s183 + $0x58] sm:$0x11]
        %v199 = vld [vmem:[%s183 + $0x60] sm:$0xff]
        %v200 = vld [vmem:[%s183 + $0x68] sm:$0xff]
        %v201 = vld [vmem:[%s183 + $0x70] sm:$0x11]
        %v202 = vld [vmem:[%s183 + $0x78] sm:$0xff]
        %v203 = vld [vmem:[%s183 + $0x80] sm:$0xff]
        %v204 = vld [vmem:[%s183 + $0x88] sm:$0x11]
        %v205 = vld [vmem:[%s183 + $0x90] sm:$0xff]
        %v206 = vld [vmem:[%s183 + $0x98] sm:$0xff]
        %v207 = vld [vmem:[%s183 + $0xa0] sm:$0x11]
        %v208 = vld [vmem:[%s183 + $0xa8] sm:$0xff]
        %v209 = vld [vmem:[%s183 + $0xb0] sm:$0xff]
        %v210 = vld [vmem:[%s183 + $0xb8] sm:$0x11]
        %v211 = vld [vmem:[%s183 + $0xc0] sm:$0xff]
        %v212 = vld [vmem:[%s183 + $0xc8] sm:$0xff]
        %v213 = vld [vmem:[%s183 + $0xd0] sm:$0x11]
        %v214 = vld [vmem:[%s183 + $0xd8] sm:$0xff]
        %v215 = vld [vmem:[%s183 + $0xe0] sm:$0xff]
        %v216 = vld [vmem:[%s183 + $0xe8] sm:$0x11]
        %v217 = vld [vmem:[%s183 + $0xf0] sm:$0xff]
        %v218 = vld [vmem:[%s183 + $0xf8] sm:$0xff]
        %v219 = vld [vmem:[%s183 + $0x100] sm:$0x11]
        %v220 = vld [vmem:[%s183 + $0x108] sm:$0xff]
        %v221 = vld [vmem:[%s183 + $0x110] sm:$0xff]
        %v222 = vld [vmem:[%s183 + $0x118] sm:$0x11]
        %v223 = vld [vmem:[%s183 + $0x120] sm:$0xff]
        %v224 = vld [vmem:[%s183 + $0x128] sm:$0xff]
        %v225 = vld [vmem:[%s183 + $0x130] sm:$0x11]
        %v226 = vld [vmem:[%s183 + $0x138] sm:$0xff]
        %v227 = vld [vmem:[%s183 + $0x140] sm:$0xff]
        %v228 = vld [vmem:[%s183 + $0x148] sm:$0x11]
        %v229 = vld [vmem:[%s183 + $0x150] sm:$0xff]
        %v230 = vld [vmem:[%s183 + $0x158] sm:$0xff]
        %v231 = vld [vmem:[%s183 + $0x160] sm:$0x11]
        %v232 = vld [vmem:[%s183 + $0x168] sm:$0xff]
        %v233 = vld [vmem:[%s183 + $0x170] sm:$0xff]
        %v234 = vld [vmem:[%s183 + $0x178] sm:$0x11]
        %v235 = vld [vmem:[%s1] sm:$0xf]
        %v236 = vld [vmem:[%s1 + $0x4] sm:$0xf]
        %v237 = vld [vmem:[%s1 + $0x8] sm:$0xf]
        %v238 = vld [vmem:[%s1 + $0xc] sm:$0xf]
        %v239 = vld [vmem:[%s1 + $0x10] sm:$0xf]
        %v240 = vld [vmem:[%s1 + $0x14] sm:$0xf]
        %v241 = vld [vmem:[%s1 + $0x18] sm:$0xf]
        %v242 = vld [vmem:[%s1 + $0x1c] sm:$0xf]
        %v243 = vld [vmem:[%s1 + $0x20] sm:$0xf]
        %v244 = vld [vmem:[%s1 + $0x24] sm:$0xf]
        %v245 = vld [vmem:[%s1 + $0x28] sm:$0xf]
        %v246 = vld [vmem:[%s1 + $0x2c] sm:$0xf]
        %v247 = vld [vmem:[%s1 + $0x30] sm:$0xf]
        %v248 = vld [vmem:[%s1 + $0x34] sm:$0xf]
        %v249 = vld [vmem:[%s1 + $0x38] sm:$0xf]
        %v250 = vld [vmem:[%s1 + $0x3c] sm:$0xf]
        %v251 = vld [vmem:[%s1 + $0x40] sm:$0xf]
        %v252 = vld [vmem:[%s1 + $0x44] sm:$0xf]
        %vm253 = vsmask.f32 3328
        %vm254 = vsmask.f32 7440
        %vm255 = vmor %vm253, %vm254
        %v257 = vshrl.u32 %v187, 16
        %v259 = vrot.slane %v257, 4
        %v260 = vshll.u32 %v187, 16
        %v262 = vrot.slane %v260, 5
        %v263 = vor.u32 %v259, %v262
        %v264 = vrot.slane %v263, 4
        %v266 = vshll.u32 %v188, 16
        %v268 = vrot.slane %v266, 5
        %v269 = vsel %vm255, %v264, %v268
        %v270 = vshrl.u32 %v188, 16
        %v272 = vrot.slane %v270, 4
        %v273 = vor.u32 %v272, %v268
        %v274 = vrot.slane %v273, 4
        %v276 = vshll.u32 %v189, 16
        %v278 = vrot.slane %v276, 5
        %v279 = vsel %vm255, %v274, %v278
        %v281 = vshrl.u32 %v190, 16
        %v283 = vrot.slane %v281, 4
        %v284 = vshll.u32 %v190, 16
        %v286 = vrot.slane %v284, 5
        %v287 = vor.u32 %v283, %v286
        %v288 = vrot.slane %v287, 4
        %v290 = vshll.u32 %v191, 16
        %v292 = vrot.slane %v290, 5
        %v293 = vsel %vm255, %v288, %v292
        %v294 = vshrl.u32 %v191, 16
        %v296 = vrot.slane %v294, 4
        %v297 = vor.u32 %v296, %v292
        %v298 = vrot.slane %v297, 4
        %v300 = vshll.u32 %v192, 16
        %v302 = vrot.slane %v300, 5
        %v303 = vsel %vm255, %v298, %v302
        %v305 = vshrl.u32 %v193, 16
        %v307 = vrot.slane %v305, 4
        %v308 = vshll.u32 %v193, 16
        %v310 = vrot.slane %v308, 5
        %v311 = vor.u32 %v307, %v310
        %v312 = vrot.slane %v311, 4
        %v314 = vshll.u32 %v194, 16
        %v316 = vrot.slane %v314, 5
        %v317 = vsel %vm255, %v312, %v316
        %v318 = vshrl.u32 %v194, 16
        %v320 = vrot.slane %v318, 4
        %v321 = vor.u32 %v320, %v316
        %v322 = vrot.slane %v321, 4
        %v324 = vshll.u32 %v195, 16
        %v326 = vrot.slane %v324, 5
        %v327 = vsel %vm255, %v322, %v326
        %v329 = vshrl.u32 %v196, 16
        %v331 = vrot.slane %v329, 4
        %v332 = vshll.u32 %v196, 16
        %v334 = vrot.slane %v332, 5
        %v335 = vor.u32 %v331, %v334
        %v336 = vrot.slane %v335, 4
        %v338 = vshll.u32 %v197, 16
        %v340 = vrot.slane %v338, 5
        %v341 = vsel %vm255, %v336, %v340
        %v342 = vshrl.u32 %v197, 16
        %v344 = vrot.slane %v342, 4
        %v345 = vor.u32 %v344, %v340
        %v346 = vrot.slane %v345, 4
        %v348 = vshll.u32 %v198, 16
        %v350 = vrot.slane %v348, 5
        %v351 = vsel %vm255, %v346, %v350
        %v353 = vshrl.u32 %v199, 16
        %v355 = vrot.slane %v353, 4
        %v356 = vshll.u32 %v199, 16
        %v358 = vrot.slane %v356, 5
        %v359 = vor.u32 %v355, %v358
        %v360 = vrot.slane %v359, 4
        %v362 = vshll.u32 %v200, 16
        %v364 = vrot.slane %v362, 5
        %v365 = vsel %vm255, %v360, %v364
        %v366 = vshrl.u32 %v200, 16
        %v368 = vrot.slane %v366, 4
        %v369 = vor.u32 %v368, %v364
        %v370 = vrot.slane %v369, 4
        %v372 = vshll.u32 %v201, 16
        %v374 = vrot.slane %v372, 5
        %v375 = vsel %vm255, %v370, %v374
        %v377 = vshrl.u32 %v202, 16
        %v379 = vrot.slane %v377, 4
        %v380 = vshll.u32 %v202, 16
        %v382 = vrot.slane %v380, 5
        %v383 = vor.u32 %v379, %v382
        %v384 = vrot.slane %v383, 4
        %v386 = vshll.u32 %v203, 16
        %v388 = vrot.slane %v386, 5
        %v389 = vsel %vm255, %v384, %v388
        %v390 = vshrl.u32 %v203, 16
        %v392 = vrot.slane %v390, 4
        %v393 = vor.u32 %v392, %v388
        %v394 = vrot.slane %v393, 4
        %v396 = vshll.u32 %v204, 16
        %v398 = vrot.slane %v396, 5
        %v399 = vsel %vm255, %v394, %v398
        %v401 = vshrl.u32 %v205, 16
        %v403 = vrot.slane %v401, 4
        %v404 = vshll.u32 %v205, 16
        %v406 = vrot.slane %v404, 5
        %v407 = vor.u32 %v403, %v406
        %v408 = vrot.slane %v407, 4
        %v410 = vshll.u32 %v206, 16
        %v412 = vrot.slane %v410, 5
        %v413 = vsel %vm255, %v408, %v412
        %v414 = vshrl.u32 %v206, 16
        %v416 = vrot.slane %v414, 4
        %v417 = vor.u32 %v416, %v412
        %v418 = vrot.slane %v417, 4
        %v420 = vshll.u32 %v207, 16
        %v422 = vrot.slane %v420, 5
        %v423 = vsel %vm255, %v418, %v422
        %v425 = vshrl.u32 %v208, 16
        %v427 = vrot.slane %v425, 4
        %v428 = vshll.u32 %v208, 16
        %v430 = vrot.slane %v428, 5
        %v431 = vor.u32 %v427, %v430
        %v432 = vrot.slane %v431, 4
        %v434 = vshll.u32 %v209, 16
        %v436 = vrot.slane %v434, 5
        %v437 = vsel %vm255, %v432, %v436
        %v438 = vshrl.u32 %v209, 16
        %v440 = vrot.slane %v438, 4
        %v441 = vor.u32 %v440, %v436
        %v442 = vrot.slane %v441, 4
        %v444 = vshll.u32 %v210, 16
        %v446 = vrot.slane %v444, 5
        %v447 = vsel %vm255, %v442, %v446
        %v449 = vshrl.u32 %v211, 16
        %v451 = vrot.slane %v449, 4
        %v452 = vshll.u32 %v211, 16
        %v454 = vrot.slane %v452, 5
        %v455 = vor.u32 %v451, %v454
        %v456 = vrot.slane %v455, 4
        %v458 = vshll.u32 %v212, 16
        %v460 = vrot.slane %v458, 5
        %v461 = vsel %vm255, %v456, %v460
        %v462 = vshrl.u32 %v212, 16
        %v464 = vrot.slane %v462, 4
        %v465 = vor.u32 %v464, %v460
        %v466 = vrot.slane %v465, 4
        %v468 = vshll.u32 %v213, 16
        %v470 = vrot.slane %v468, 5
        %v471 = vsel %vm255, %v466, %v470
        %v473 = vshrl.u32 %v214, 16
        %v475 = vrot.slane %v473, 4
        %v476 = vshll.u32 %v214, 16
        %v478 = vrot.slane %v476, 5
        %v479 = vor.u32 %v475, %v478
        %v480 = vrot.slane %v479, 4
        %v482 = vshll.u32 %v215, 16
        %v484 = vrot.slane %v482, 5
        %v485 = vsel %vm255, %v480, %v484
        %v486 = vshrl.u32 %v215, 16
        %v488 = vrot.slane %v486, 4
        %v489 = vor.u32 %v488, %v484
        %v490 = vrot.slane %v489, 4
        %v492 = vshll.u32 %v216, 16
        %v494 = vrot.slane %v492, 5
        %v495 = vsel %vm255, %v490, %v494
        %v497 = vshrl.u32 %v217, 16
        %v499 = vrot.slane %v497, 4
        %v500 = vshll.u32 %v217, 16
        %v502 = vrot.slane %v500, 5
        %v503 = vor.u32 %v499, %v502
        %v504 = vrot.slane %v503, 4
        %v506 = vshll.u32 %v218, 16
        %v508 = vrot.slane %v506, 5
        %v509 = vsel %vm255, %v504, %v508
        %v510 = vshrl.u32 %v218, 16
        %v512 = vrot.slane %v510, 4
        %v513 = vor.u32 %v512, %v508
        %v514 = vrot.slane %v513, 4
        %v516 = vshll.u32 %v219, 16
        %v518 = vrot.slane %v516, 5
        %v519 = vsel %vm255, %v514, %v518
        %v521 = vshrl.u32 %v220, 16
        %v523 = vrot.slane %v521, 4
        %v524 = vshll.u32 %v220, 16
        %v526 = vrot.slane %v524, 5
        %v527 = vor.u32 %v523, %v526
        %v528 = vrot.slane %v527, 4
        %v530 = vshll.u32 %v221, 16
        %v532 = vrot.slane %v530, 5
        %v533 = vsel %vm255, %v528, %v532
        %v534 = vshrl.u32 %v221, 16
        %v536 = vrot.slane %v534, 4
        %v537 = vor.u32 %v536, %v532
        %v538 = vrot.slane %v537, 4
        %v540 = vshll.u32 %v222, 16
        %v542 = vrot.slane %v540, 5
        %v543 = vsel %vm255, %v538, %v542
        %v545 = vshrl.u32 %v223, 16
        %v547 = vrot.slane %v545, 4
        %v548 = vshll.u32 %v223, 16
        %v550 = vrot.slane %v548, 5
        %v551 = vor.u32 %v547, %v550
        %v552 = vrot.slane %v551, 4
        %v554 = vshll.u32 %v224, 16
        %v556 = vrot.slane %v554, 5
        %v557 = vsel %vm255, %v552, %v556
        %v558 = vshrl.u32 %v224, 16
        %v560 = vrot.slane %v558, 4
        %v561 = vor.u32 %v560, %v556
        %v562 = vrot.slane %v561, 4
        %v564 = vshll.u32 %v225, 16
        %v566 = vrot.slane %v564, 5
        %v567 = vsel %vm255, %v562, %v566
        %v569 = vshrl.u32 %v226, 16
        %v571 = vrot.slane %v569, 4
        %v572 = vshll.u32 %v226, 16
        %v574 = vrot.slane %v572, 5
        %v575 = vor.u32 %v571, %v574
        %v576 = vrot.slane %v575, 4
        %v578 = vshll.u32 %v227, 16
        %v580 = vrot.slane %v578, 5
        %v581 = vsel %vm255, %v576, %v580
        %v582 = vshrl.u32 %v227, 16
        %v584 = vrot.slane %v582, 4
        %v585 = vor.u32 %v584, %v580
        %v586 = vrot.slane %v585, 4
        %v588 = vshll.u32 %v228, 16
        %v590 = vrot.slane %v588, 5
        %v591 = vsel %vm255, %v586, %v590
        %v593 = vshrl.u32 %v229, 16
        %v595 = vrot.slane %v593, 4
        %v596 = vshll.u32 %v229, 16
        %v598 = vrot.slane %v596, 5
        %v599 = vor.u32 %v595, %v598
        %v600 = vrot.slane %v599, 4
        %v602 = vshll.u32 %v230, 16
        %v604 = vrot.slane %v602, 5
        %v605 = vsel %vm255, %v600, %v604
        %v606 = vshrl.u32 %v230, 16
        %v608 = vrot.slane %v606, 4
        %v609 = vor.u32 %v608, %v604
        %v610 = vrot.slane %v609, 4
        %v612 = vshll.u32 %v231, 16
        %v614 = vrot.slane %v612, 5
        %v615 = vsel %vm255, %v610, %v614
        %v617 = vshrl.u32 %v232, 16
        %v619 = vrot.slane %v617, 4
        %v620 = vshll.u32 %v232, 16
        %v622 = vrot.slane %v620, 5
        %v623 = vor.u32 %v619, %v622
        %v624 = vrot.slane %v623, 4
        %v626 = vshll.u32 %v233, 16
        %v628 = vrot.slane %v626, 5
        %v629 = vsel %vm255, %v624, %v628
        %v630 = vshrl.u32 %v233, 16
        %v632 = vrot.slane %v630, 4
        %v633 = vor.u32 %v632, %v628
        %v634 = vrot.slane %v633, 4
        %v636 = vshll.u32 %v234, 16
        %v638 = vrot.slane %v636, 5
        %v639 = vsel %vm255, %v634, %v638
        %s640 = scalar_lea.vmem %s1, 72
        %v641 = vld [vmem:[%s640] sm:$0xf]
        %v642 = vld [vmem:[%s640 + $0x4] sm:$0xf]
        %v643 = vld [vmem:[%s640 + $0x8] sm:$0xf]
        %v644 = vld [vmem:[%s640 + $0xc] sm:$0xf]
        %v645 = vld [vmem:[%s640 + $0x10] sm:$0xf]
        %v646 = vld [vmem:[%s640 + $0x14] sm:$0xf]
        %v647 = vld [vmem:[%s640 + $0x18] sm:$0xf]
        %v648 = vld [vmem:[%s640 + $0x1c] sm:$0xf]
        %v649 = vld [vmem:[%s640 + $0x20] sm:$0xf]
        %v650 = vld [vmem:[%s640 + $0x24] sm:$0xf]
        %v651 = vld [vmem:[%s640 + $0x28] sm:$0xf]
        %v652 = vld [vmem:[%s640 + $0x2c] sm:$0xf]
        %v653 = vld [vmem:[%s640 + $0x30] sm:$0xf]
        %v654 = vld [vmem:[%s640 + $0x34] sm:$0xf]
        %v655 = vld [vmem:[%s640 + $0x38] sm:$0xf]
        %v656 = vld [vmem:[%s640 + $0x3c] sm:$0xf]
        %v657 = vld [vmem:[%s640 + $0x40] sm:$0xf]
        %v658 = vld [vmem:[%s640 + $0x44] sm:$0xf]
        %v659 = vunpack.c.l.b16 %v269
        %v660 = vunpack.c.h.b16 %v269
        %v661 = vunpack.c.l.b16 %v279
        %v662 = vunpack.c.h.b16 %v279
        %v663 = vunpack.c.l.b16 %v293
        %v664 = vunpack.c.h.b16 %v293
        %v665 = vunpack.c.l.b16 %v303
        %v666 = vunpack.c.h.b16 %v303
        %v667 = vunpack.c.l.b16 %v317
        %v668 = vunpack.c.h.b16 %v317
        %v669 = vunpack.c.l.b16 %v327
        %v670 = vunpack.c.h.b16 %v327
        %v671 = vunpack.c.l.b16 %v341
        %v672 = vunpack.c.h.b16 %v341
        %v673 = vunpack.c.l.b16 %v351
        %v674 = vunpack.c.h.b16 %v351
        %v675 = vunpack.c.l.b16 %v365
        %v676 = vunpack.c.h.b16 %v365
        %v677 = vunpack.c.l.b16 %v375
        %v678 = vunpack.c.h.b16 %v375
        %v679 = vunpack.c.l.b16 %v389
        %v680 = vunpack.c.h.b16 %v389
        %v681 = vunpack.c.l.b16 %v399
        %v682 = vunpack.c.h.b16 %v399
        %v683 = vunpack.c.l.b16 %v413
        %v684 = vunpack.c.h.b16 %v413
        %v685 = vunpack.c.l.b16 %v423
        %v686 = vunpack.c.h.b16 %v423
        %v687 = vunpack.c.l.b16 %v437
        %v688 = vunpack.c.h.b16 %v437
        %v689 = vunpack.c.l.b16 %v447
        %v690 = vunpack.c.h.b16 %v447
        %v691 = vunpack.c.l.b16 %v461
        %v692 = vunpack.c.h.b16 %v461
        %v693 = vunpack.c.l.b16 %v471
        %v694 = vunpack.c.h.b16 %v471
        %v695 = vunpack.c.l.b16 %v485
        %v696 = vunpack.c.h.b16 %v485
        %v697 = vunpack.c.l.b16 %v495
        %v698 = vunpack.c.h.b16 %v495
        %v699 = vunpack.c.l.b16 %v509
        %v700 = vunpack.c.h.b16 %v509
        %v701 = vunpack.c.l.b16 %v519
        %v702 = vunpack.c.h.b16 %v519
        %v703 = vunpack.c.l.b16 %v533
        %v704 = vunpack.c.h.b16 %v533
        %v705 = vunpack.c.l.b16 %v543
        %v706 = vunpack.c.h.b16 %v543
        %v707 = vunpack.c.l.b16 %v557
        %v708 = vunpack.c.h.b16 %v557
        %v709 = vunpack.c.l.b16 %v567
        %v710 = vunpack.c.h.b16 %v567
        %v711 = vunpack.c.l.b16 %v581
        %v712 = vunpack.c.h.b16 %v581
        %v713 = vunpack.c.l.b16 %v591
        %v714 = vunpack.c.h.b16 %v591
        %v715 = vunpack.c.l.b16 %v605
        %v716 = vunpack.c.h.b16 %v605
        %v717 = vunpack.c.l.b16 %v615
        %v718 = vunpack.c.h.b16 %v615
        %v719 = vunpack.c.l.b16 %v629
        %v720 = vunpack.c.h.b16 %v629
        %v721 = vunpack.c.l.b16 %v639
        %v722 = vunpack.c.h.b16 %v639
        %v723 = vpack.c.b16 %v661, %v659
        %v724 = vpack.c.b16 %v662, %v660
        %v725 = vpack.c.b16 %v665, %v663
        %v726 = vpack.c.b16 %v666, %v664
        %v727 = vpack.c.b16 %v669, %v667
        %v728 = vpack.c.b16 %v670, %v668
        %v729 = vpack.c.b16 %v673, %v671
        %v730 = vpack.c.b16 %v674, %v672
        %v731 = vpack.c.b16 %v677, %v675
        %v732 = vpack.c.b16 %v678, %v676
        %v733 = vpack.c.b16 %v681, %v679
        %v734 = vpack.c.b16 %v682, %v680
        %v735 = vpack.c.b16 %v685, %v683
        %v736 = vpack.c.b16 %v686, %v684
        %v737 = vpack.c.b16 %v689, %v687
        %v738 = vpack.c.b16 %v690, %v688
        %v739 = vpack.c.b16 %v693, %v691
        %v740 = vpack.c.b16 %v694, %v692
        %v741 = vpack.c.b16 %v697, %v695
        %v742 = vpack.c.b16 %v698, %v696
        %v743 = vpack.c.b16 %v701, %v699
        %v744 = vpack.c.b16 %v702, %v700
        %v745 = vpack.c.b16 %v705, %v703
        %v746 = vpack.c.b16 %v706, %v704
        %v747 = vpack.c.b16 %v709, %v707
        %v748 = vpack.c.b16 %v710, %v708
        %v749 = vpack.c.b16 %v713, %v711
        %v750 = vpack.c.b16 %v714, %v712
        %v751 = vpack.c.b16 %v717, %v715
        %v752 = vpack.c.b16 %v718, %v716
        %v753 = vpack.c.b16 %v721, %v719
        %v754 = vpack.c.b16 %v722, %v720
        %v789 = vunpack.c.l.b16 %v641
        %v790 = vunpack.c.l.b16 %v642
        %v791 = vunpack.c.l.b16 %v643
        %v792 = vunpack.c.l.b16 %v644
        %v793 = vunpack.c.l.b16 %v645
        %v794 = vunpack.c.l.b16 %v646
        %v795 = vunpack.c.l.b16 %v647
        %v796 = vunpack.c.l.b16 %v648
        %v797 = vunpack.c.l.b16 %v649
        %v798 = vunpack.c.l.b16 %v650
        %v799 = vunpack.c.l.b16 %v651
        %v800 = vunpack.c.l.b16 %v652
        %v801 = vunpack.c.l.b16 %v653
        %v802 = vunpack.c.l.b16 %v654
        %v803 = vunpack.c.l.b16 %v655
        %v804 = vunpack.c.l.b16 %v656
        %v805 = vunpack.c.l.b16 %v657
        %v806 = vunpack.c.l.b16 %v658
        %v807 = vpack.c.b16 %v790, %v789
        %v808 = vpack.c.b16 %v792, %v791
        %v809 = vpack.c.b16 %v794, %v793
        %v810 = vpack.c.b16 %v796, %v795
        %v811 = vpack.c.b16 %v798, %v797
        %v812 = vpack.c.b16 %v800, %v799
        %v813 = vpack.c.b16 %v802, %v801
        %v814 = vpack.c.b16 %v804, %v803
        %v815 = vpack.c.b16 %v806, %v805
        %vm825 = vcmask 130048
        %v827 = vsel %vm825, %v724, 0
        %v830 = vsel %vm825, %v726, 0
        %v833 = vsel %vm825, %v728, 0
        %v836 = vsel %vm825, %v730, 0
        %v839 = vsel %vm825, %v732, 0
        %v842 = vsel %vm825, %v734, 0
        %v845 = vsel %vm825, %v736, 0
        %v848 = vsel %vm825, %v738, 0
        %v851 = vsel %vm825, %v740, 0
        %v854 = vsel %vm825, %v742, 0
        %v857 = vsel %vm825, %v744, 0
        %v860 = vsel %vm825, %v746, 0
        %v863 = vsel %vm825, %v748, 0
        %v866 = vsel %vm825, %v750, 0
        %v869 = vsel %vm825, %v752, 0
        %v872 = vsel %vm825, %v754, 0
        %874 = vmatprep.subr.bf16.mxu0 0
        %875 = vmatpush1.bf16.msra.mxu0 %v807
        %876 = vmatprep.subr.bf16.mxu0 0
        %877 = vmatpush1.bf16.msra.mxu0 %v808
        %878 = vmatprep.subr.bf16.mxu0 0
        %879 = vmatpush1.bf16.msra.mxu0 %v809
        %880 = vmatprep.subr.bf16.mxu0 0
        %881 = vmatpush1.bf16.msra.mxu0 %v810
        %882 = vmatprep.subr.bf16.mxu0 0
        %883 = vmatpush1.bf16.msra.mxu0 %v811
        %884 = vmatprep.subr.bf16.mxu0 0
        %885 = vmatpush1.bf16.msra.mxu0 %v812
        %886 = vmatprep.subr.bf16.mxu0 0
        %887 = vmatpush1.bf16.msra.mxu0 %v813
        %888 = vmatprep.subr.bf16.mxu0 0
        %889 = vmatpush1.bf16.msra.mxu0 %v814
        %890 = vmatprep.subr.bf16.mxu0 0
        %891 = vmatpush1.bf16.msra.mxu0 %v815
        %892 = vmatprep.subr.bf16.mxu0 0
        %893 = vmatpush1.bf16.msra.mxu0 0
        %894 = vmatprep.subr.bf16.mxu0 0
        %895 = vmatpush1.bf16.msra.mxu0 0
        %896 = vmatprep.subr.bf16.mxu0 0
        %897 = vmatpush1.bf16.msra.mxu0 0
        %898 = vmatprep.subr.bf16.mxu0 0
        %899 = vmatpush1.bf16.msra.mxu0 0
        %900 = vmatprep.subr.bf16.mxu0 0
        %901 = vmatpush1.bf16.msra.mxu0 0
        %902 = vmatprep.subr.bf16.mxu0 0
        %903 = vmatpush1.bf16.msra.mxu0 0
        %904 = vmatprep.subr.bf16.mxu0 0
        %905 = vmatpush1.bf16.msra.mxu0 0
        %906 = vmatprep.mubr.bf16.mxu0 %v827
        %907 = vmatmul.mubr.bf16.gmra.mrb[0].mxu0 %v723
        %v908 = vpop.f32.mrb[0].mxu0
        %v909 = vadd.f32 0.0, %v908
        %v910 = vpop.f32.mrb[0].mxu0
        %v911 = vpop.f32.mrb[0].mxu0
        %v912 = vadd.f32 0.0, %v911
        %v913 = vpop.f32.mrb[0].mxu0
        %914 = vmatprep.mubr.bf16.mxu0 %v830
        %915 = vmatmul.mubr.bf16.gmra.mrb[0].mxu0 %v725
        %v916 = vpop.f32.mrb[0].mxu0
        %v917 = vadd.f32 0.0, %v916
        %v918 = vpop.f32.mrb[0].mxu0
        %v919 = vpop.f32.mrb[0].mxu0
        %v920 = vadd.f32 0.0, %v919
        %v921 = vpop.f32.mrb[0].mxu0
        %922 = vmatprep.mubr.bf16.mxu0 %v833
        %923 = vmatmul.mubr.bf16.gmra.mrb[0].mxu0 %v727
        %v924 = vpop.f32.mrb[0].mxu0
        %v925 = vadd.f32 0.0, %v924
        %v926 = vpop.f32.mrb[0].mxu0
        %v927 = vpop.f32.mrb[0].mxu0
        %v928 = vadd.f32 0.0, %v927
        %v929 = vpop.f32.mrb[0].mxu0
        %930 = vmatprep.mubr.bf16.mxu0 %v836
        %931 = vmatmul.mubr.bf16.gmra.mrb[0].mxu0 %v729
        %v932 = vpop.f32.mrb[0].mxu0
        %v933 = vadd.f32 0.0, %v932
        %v934 = vpop.f32.mrb[0].mxu0
        %v935 = vpop.f32.mrb[0].mxu0
        %v936 = vadd.f32 0.0, %v935
        %v937 = vpop.f32.mrb[0].mxu0
        %938 = vmatprep.mubr.bf16.mxu0 %v839
        %939 = vmatmul.mubr.bf16.gmra.mrb[0].mxu0 %v731
        %v940 = vpop.f32.mrb[0].mxu0
        %v941 = vadd.f32 0.0, %v940
        %v942 = vpop.f32.mrb[0].mxu0
        %v943 = vpop.f32.mrb[0].mxu0
        %v944 = vadd.f32 0.0, %v943
        %v945 = vpop.f32.mrb[0].mxu0
        %946 = vmatprep.mubr.bf16.mxu0 %v842
        %947 = vmatmul.mubr.bf16.gmra.mrb[0].mxu0 %v733
        %v948 = vpop.f32.mrb[0].mxu0
        %v949 = vadd.f32 0.0, %v948
        %v950 = vpop.f32.mrb[0].mxu0
        %v951 = vpop.f32.mrb[0].mxu0
        %v952 = vadd.f32 0.0, %v951
        %v953 = vpop.f32.mrb[0].mxu0
        %954 = vmatprep.mubr.bf16.mxu0 %v845
        %955 = vmatmul.mubr.bf16.gmra.mrb[0].mxu0 %v735
        %v956 = vpop.f32.mrb[0].mxu0
        %v957 = vadd.f32 0.0, %v956
        %v958 = vpop.f32.mrb[0].mxu0
        %v959 = vpop.f32.mrb[0].mxu0
        %v960 = vadd.f32 0.0, %v959
        %v961 = vpop.f32.mrb[0].mxu0
        %962 = vmatprep.mubr.bf16.mxu0 %v848
        %963 = vmatmul.mubr.bf16.gmra.mrb[0].mxu0 %v737
        %v964 = vpop.f32.mrb[0].mxu0
        %v965 = vadd.f32 0.0, %v964
        %v966 = vpop.f32.mrb[0].mxu0
        %v967 = vpop.f32.mrb[0].mxu0
        %v968 = vadd.f32 0.0, %v967
        %v969 = vpop.f32.mrb[0].mxu0
        %970 = vmatprep.mubr.bf16.mxu0 %v851
        %971 = vmatmul.mubr.bf16.gmra.mrb[0].mxu0 %v739
        %v972 = vpop.f32.mrb[0].mxu0
        %v973 = vadd.f32 0.0, %v972
        %v974 = vpop.f32.mrb[0].mxu0
        %v975 = vpop.f32.mrb[0].mxu0
        %v976 = vadd.f32 0.0, %v975
        %v977 = vpop.f32.mrb[0].mxu0
        %978 = vmatprep.mubr.bf16.mxu0 %v854
        %979 = vmatmul.mubr.bf16.gmra.mrb[0].mxu0 %v741
        %v980 = vpop.f32.mrb[0].mxu0
        %v981 = vadd.f32 0.0, %v980
        %v982 = vpop.f32.mrb[0].mxu0
        %v983 = vpop.f32.mrb[0].mxu0
        %v984 = vadd.f32 0.0, %v983
        %v985 = vpop.f32.mrb[0].mxu0
        %986 = vmatprep.mubr.bf16.mxu0 %v857
        %987 = vmatmul.mubr.bf16.gmra.mrb[0].mxu0 %v743
        %v988 = vpop.f32.mrb[0].mxu0
        %v989 = vadd.f32 0.0, %v988
        %v990 = vpop.f32.mrb[0].mxu0
        %v991 = vpop.f32.mrb[0].mxu0
        %v992 = vadd.f32 0.0, %v991
        %v993 = vpop.f32.mrb[0].mxu0
        %994 = vmatprep.mubr.bf16.mxu0 %v860
        %995 = vmatmul.mubr.bf16.gmra.mrb[0].mxu0 %v745
        %v996 = vpop.f32.mrb[0].mxu0
        %v997 = vadd.f32 0.0, %v996
        %v998 = vpop.f32.mrb[0].mxu0
        %v999 = vpop.f32.mrb[0].mxu0
        %v1000 = vadd.f32 0.0, %v999
        %v1001 = vpop.f32.mrb[0].mxu0
        %1002 = vmatprep.mubr.bf16.mxu0 %v863
        %1003 = vmatmul.mubr.bf16.gmra.mrb[0].mxu0 %v747
        %v1004 = vpop.f32.mrb[0].mxu0
        %v1005 = vadd.f32 0.0, %v1004
        %v1006 = vpop.f32.mrb[0].mxu0
        %v1007 = vpop.f32.mrb[0].mxu0
        %v1008 = vadd.f32 0.0, %v1007
        %v1009 = vpop.f32.mrb[0].mxu0
        %1010 = vmatprep.mubr.bf16.mxu0 %v866
        %1011 = vmatmul.mubr.bf16.gmra.mrb[0].mxu0 %v749
        %v1012 = vpop.f32.mrb[0].mxu0
        %v1013 = vadd.f32 0.0, %v1012
        %v1014 = vpop.f32.mrb[0].mxu0
        %v1015 = vpop.f32.mrb[0].mxu0
        %v1016 = vadd.f32 0.0, %v1015
        %v1017 = vpop.f32.mrb[0].mxu0
        %1018 = vmatprep.mubr.bf16.mxu0 %v869
        %1019 = vmatmul.mubr.bf16.gmra.mrb[0].mxu0 %v751
        %v1020 = vpop.f32.mrb[0].mxu0
        %v1021 = vadd.f32 0.0, %v1020
        %v1022 = vpop.f32.mrb[0].mxu0
        %v1023 = vpop.f32.mrb[0].mxu0
        %v1024 = vadd.f32 0.0, %v1023
        %v1025 = vpop.f32.mrb[0].mxu0
        %1026 = vmatprep.mubr.bf16.mxu0 %v872
        %1027 = vmatmul.mubr.bf16.gmra.mrb[0].mxu0 %v753
        %v1028 = vpop.f32.mrb[0].mxu0
        %v1029 = vadd.f32 0.0, %v1028
        %v1030 = vpop.f32.mrb[0].mxu0
        %v1031 = vpop.f32.mrb[0].mxu0
        %v1032 = vadd.f32 0.0, %v1031
        %v1033 = vpop.f32.mrb[0].mxu0
        %1034 = vdwg.mxu0
        %v1067 = vunpack.c.l.b16 %v187
        %v1068 = vunpack.c.h.b16 %v187
        %v1069 = vunpack.c.l.b16 %v188
        %v1070 = vunpack.c.h.b16 %v188
        %v1071 = vunpack.c.l.b16 %v190
        %v1072 = vunpack.c.h.b16 %v190
        %v1073 = vunpack.c.l.b16 %v191
        %v1074 = vunpack.c.h.b16 %v191
        %v1075 = vunpack.c.l.b16 %v193
        %v1076 = vunpack.c.h.b16 %v193
        %v1077 = vunpack.c.l.b16 %v194
        %v1078 = vunpack.c.h.b16 %v194
        %v1079 = vunpack.c.l.b16 %v196
        %v1080 = vunpack.c.h.b16 %v196
        %v1081 = vunpack.c.l.b16 %v197
        %v1082 = vunpack.c.h.b16 %v197
        %v1083 = vunpack.c.l.b16 %v199
        %v1084 = vunpack.c.h.b16 %v199
        %v1085 = vunpack.c.l.b16 %v200
        %v1086 = vunpack.c.h.b16 %v200
        %v1087 = vunpack.c.l.b16 %v202
        %v1088 = vunpack.c.h.b16 %v202
        %v1089 = vunpack.c.l.b16 %v203
        %v1090 = vunpack.c.h.b16 %v203
        %v1091 = vunpack.c.l.b16 %v205
        %v1092 = vunpack.c.h.b16 %v205
        %v1093 = vunpack.c.l.b16 %v206
        %v1094 = vunpack.c.h.b16 %v206
        %v1095 = vunpack.c.l.b16 %v208
        %v1096 = vunpack.c.h.b16 %v208
        %v1097 = vunpack.c.l.b16 %v209
        %v1098 = vunpack.c.h.b16 %v209
        %v1099 = vunpack.c.l.b16 %v211
        %v1100 = vunpack.c.h.b16 %v211
        %v1101 = vunpack.c.l.b16 %v212
        %v1102 = vunpack.c.h.b16 %v212
        %v1103 = vunpack.c.l.b16 %v214
        %v1104 = vunpack.c.h.b16 %v214
        %v1105 = vunpack.c.l.b16 %v215
        %v1106 = vunpack.c.h.b16 %v215
        %v1107 = vunpack.c.l.b16 %v217
        %v1108 = vunpack.c.h.b16 %v217
        %v1109 = vunpack.c.l.b16 %v218
        %v1110 = vunpack.c.h.b16 %v218
        %v1111 = vunpack.c.l.b16 %v220
        %v1112 = vunpack.c.h.b16 %v220
        %v1113 = vunpack.c.l.b16 %v221
        %v1114 = vunpack.c.h.b16 %v221
        %v1115 = vunpack.c.l.b16 %v223
        %v1116 = vunpack.c.h.b16 %v223
        %v1117 = vunpack.c.l.b16 %v224
        %v1118 = vunpack.c.h.b16 %v224
        %v1119 = vunpack.c.l.b16 %v226
        %v1120 = vunpack.c.h.b16 %v226
        %v1121 = vunpack.c.l.b16 %v227
        %v1122 = vunpack.c.h.b16 %v227
        %v1123 = vunpack.c.l.b16 %v229
        %v1124 = vunpack.c.h.b16 %v229
        %v1125 = vunpack.c.l.b16 %v230
        %v1126 = vunpack.c.h.b16 %v230
        %v1127 = vunpack.c.l.b16 %v232
        %v1128 = vunpack.c.h.b16 %v232
        %v1129 = vunpack.c.l.b16 %v233
        %v1130 = vunpack.c.h.b16 %v233
        %v1131 = vpack.c.b16 %v1069, %v1067
        %v1132 = vpack.c.b16 %v1070, %v1068
        %v1133 = vpack.c.b16 %v1073, %v1071
        %v1134 = vpack.c.b16 %v1074, %v1072
        %v1135 = vpack.c.b16 %v1077, %v1075
        %v1136 = vpack.c.b16 %v1078, %v1076
        %v1137 = vpack.c.b16 %v1081, %v1079
        %v1138 = vpack.c.b16 %v1082, %v1080
        %v1139 = vpack.c.b16 %v1085, %v1083
        %v1140 = vpack.c.b16 %v1086, %v1084
        %v1141 = vpack.c.b16 %v1089, %v1087
        %v1142 = vpack.c.b16 %v1090, %v1088
        %v1143 = vpack.c.b16 %v1093, %v1091
        %v1144 = vpack.c.b16 %v1094, %v1092
        %v1145 = vpack.c.b16 %v1097, %v1095
        %v1146 = vpack.c.b16 %v1098, %v1096
        %v1147 = vpack.c.b16 %v1101, %v1099
        %v1148 = vpack.c.b16 %v1102, %v1100
        %v1149 = vpack.c.b16 %v1105, %v1103
        %v1150 = vpack.c.b16 %v1106, %v1104
        %v1151 = vpack.c.b16 %v1109, %v1107
        %v1152 = vpack.c.b16 %v1110, %v1108
        %v1153 = vpack.c.b16 %v1113, %v1111
        %v1154 = vpack.c.b16 %v1114, %v1112
        %v1155 = vpack.c.b16 %v1117, %v1115
        %v1156 = vpack.c.b16 %v1118, %v1116
        %v1157 = vpack.c.b16 %v1121, %v1119
        %v1158 = vpack.c.b16 %v1122, %v1120
        %v1159 = vpack.c.b16 %v1125, %v1123
        %v1160 = vpack.c.b16 %v1126, %v1124
        %v1161 = vpack.c.b16 %v1129, %v1127
        %v1162 = vpack.c.b16 %v1130, %v1128
        %v1197 = vunpack.c.l.b16 %v235
        %v1198 = vunpack.c.l.b16 %v236
        %v1199 = vunpack.c.l.b16 %v237
        %v1200 = vunpack.c.l.b16 %v238
        %v1201 = vunpack.c.l.b16 %v239
        %v1202 = vunpack.c.l.b16 %v240
        %v1203 = vunpack.c.l.b16 %v241
        %v1204 = vunpack.c.l.b16 %v242
        %v1205 = vunpack.c.l.b16 %v243
        %v1206 = vunpack.c.l.b16 %v244
        %v1207 = vunpack.c.l.b16 %v245
        %v1208 = vunpack.c.l.b16 %v246
        %v1209 = vunpack.c.l.b16 %v247
        %v1210 = vunpack.c.l.b16 %v248
        %v1211 = vunpack.c.l.b16 %v249
        %v1212 = vunpack.c.l.b16 %v250
        %v1213 = vunpack.c.l.b16 %v251
        %v1214 = vunpack.c.l.b16 %v252
        %v1215 = vpack.c.b16 %v1198, %v1197
        %v1216 = vpack.c.b16 %v1200, %v1199
        %v1217 = vpack.c.b16 %v1202, %v1201
        %v1218 = vpack.c.b16 %v1204, %v1203
        %v1219 = vpack.c.b16 %v1206, %v1205
        %v1220 = vpack.c.b16 %v1208, %v1207
        %v1221 = vpack.c.b16 %v1210, %v1209
        %v1222 = vpack.c.b16 %v1212, %v1211
        %v1223 = vpack.c.b16 %v1214, %v1213
        %v1234 = vsel %vm825, %v1132, 0
        %v1237 = vsel %vm825, %v1134, 0
        %v1240 = vsel %vm825, %v1136, 0
        %v1243 = vsel %vm825, %v1138, 0
        %v1246 = vsel %vm825, %v1140, 0
        %v1249 = vsel %vm825, %v1142, 0
        %v1252 = vsel %vm825, %v1144, 0
        %v1255 = vsel %vm825, %v1146, 0
        %v1258 = vsel %vm825, %v1148, 0
        %v1261 = vsel %vm825, %v1150, 0
        %v1264 = vsel %vm825, %v1152, 0
        %v1267 = vsel %vm825, %v1154, 0
        %v1270 = vsel %vm825, %v1156, 0
        %v1273 = vsel %vm825, %v1158, 0
        %v1276 = vsel %vm825, %v1160, 0
        %v1279 = vsel %vm825, %v1162, 0
        %1281 = vmatprep.subr.bf16.mxu0 0
        %1282 = vmatpush1.bf16.msra.mxu0 %v1215
        %1283 = vmatprep.subr.bf16.mxu0 0
        %1284 = vmatpush1.bf16.msra.mxu0 %v1216
        %1285 = vmatprep.subr.bf16.mxu0 0
        %1286 = vmatpush1.bf16.msra.mxu0 %v1217
        %1287 = vmatprep.subr.bf16.mxu0 0
        %1288 = vmatpush1.bf16.msra.mxu0 %v1218
        %1289 = vmatprep.subr.bf16.mxu0 0
        %1290 = vmatpush1.bf16.msra.mxu0 %v1219
        %1291 = vmatprep.subr.bf16.mxu0 0
        %1292 = vmatpush1.bf16.msra.mxu0 %v1220
        %1293 = vmatprep.subr.bf16.mxu0 0
        %1294 = vmatpush1.bf16.msra.mxu0 %v1221
        %1295 = vmatprep.subr.bf16.mxu0 0
        %1296 = vmatpush1.bf16.msra.mxu0 %v1222
        %1297 = vmatprep.subr.bf16.mxu0 0
        %1298 = vmatpush1.bf16.msra.mxu0 %v1223
        %1299 = vmatprep.subr.bf16.mxu0 0
        %1300 = vmatpush1.bf16.msra.mxu0 0
        %1301 = vmatprep.subr.bf16.mxu0 0
        %1302 = vmatpush1.bf16.msra.mxu0 0
        %1303 = vmatprep.subr.bf16.mxu0 0
        %1304 = vmatpush1.bf16.msra.mxu0 0
        %1305 = vmatprep.subr.bf16.mxu0 0
        %1306 = vmatpush1.bf16.msra.mxu0 0
        %1307 = vmatprep.subr.bf16.mxu0 0
        %1308 = vmatpush1.bf16.msra.mxu0 0
        %1309 = vmatprep.subr.bf16.mxu0 0
        %1310 = vmatpush1.bf16.msra.mxu0 0
        %1311 = vmatprep.subr.bf16.mxu0 0
        %1312 = vmatpush1.bf16.msra.mxu0 0
        %1313 = vmatprep.mubr.bf16.mxu0 %v1234
        %1314 = vmatmul.mubr.bf16.gmra.mrb[0].mxu0 %v1131
        %v1315 = vpop.f32.mrb[0].mxu0
        %v1316 = vadd.f32 %v909, %v1315
        %v1317 = vpop.f32.mrb[0].mxu0
        %v1318 = vpop.f32.mrb[0].mxu0
        %v1319 = vadd.f32 %v912, %v1318
        %v1320 = vpop.f32.mrb[0].mxu0
        %1321 = vmatprep.mubr.bf16.mxu0 %v1237
        %1322 = vmatmul.mubr.bf16.gmra.mrb[0].mxu0 %v1133
        %v1323 = vpop.f32.mrb[0].mxu0
        %v1324 = vadd.f32 %v917, %v1323
        %v1325 = vpop.f32.mrb[0].mxu0
        %v1326 = vpop.f32.mrb[0].mxu0
        %v1327 = vadd.f32 %v920, %v1326
        %v1328 = vpop.f32.mrb[0].mxu0
        %1329 = vmatprep.mubr.bf16.mxu0 %v1240
        %1330 = vmatmul.mubr.bf16.gmra.mrb[0].mxu0 %v1135
        %v1331 = vpop.f32.mrb[0].mxu0
        %v1332 = vadd.f32 %v925, %v1331
        %v1333 = vpop.f32.mrb[0].mxu0
        %v1334 = vpop.f32.mrb[0].mxu0
        %v1335 = vadd.f32 %v928, %v1334
        %v1336 = vpop.f32.mrb[0].mxu0
        %1337 = vmatprep.mubr.bf16.mxu0 %v1243
        %1338 = vmatmul.mubr.bf16.gmra.mrb[0].mxu0 %v1137
        %v1339 = vpop.f32.mrb[0].mxu0
        %v1340 = vadd.f32 %v933, %v1339
        %v1341 = vpop.f32.mrb[0].mxu0
        %v1342 = vpop.f32.mrb[0].mxu0
        %v1343 = vadd.f32 %v936, %v1342
        %v1344 = vpop.f32.mrb[0].mxu0
        %1345 = vmatprep.mubr.bf16.mxu0 %v1246
        %1346 = vmatmul.mubr.bf16.gmra.mrb[0].mxu0 %v1139
        %v1347 = vpop.f32.mrb[0].mxu0
        %v1348 = vadd.f32 %v941, %v1347
        %v1349 = vpop.f32.mrb[0].mxu0
        %v1350 = vpop.f32.mrb[0].mxu0
        %v1351 = vadd.f32 %v944, %v1350
        %v1352 = vpop.f32.mrb[0].mxu0
        %1353 = vmatprep.mubr.bf16.mxu0 %v1249
        %1354 = vmatmul.mubr.bf16.gmra.mrb[0].mxu0 %v1141
        %v1355 = vpop.f32.mrb[0].mxu0
        %v1356 = vadd.f32 %v949, %v1355
        %v1357 = vpop.f32.mrb[0].mxu0
        %v1358 = vpop.f32.mrb[0].mxu0
        %v1359 = vadd.f32 %v952, %v1358
        %v1360 = vpop.f32.mrb[0].mxu0
        %1361 = vmatprep.mubr.bf16.mxu0 %v1252
        %1362 = vmatmul.mubr.bf16.gmra.mrb[0].mxu0 %v1143
        %v1363 = vpop.f32.mrb[0].mxu0
        %v1364 = vadd.f32 %v957, %v1363
        %v1365 = vpop.f32.mrb[0].mxu0
        %v1366 = vpop.f32.mrb[0].mxu0
        %v1367 = vadd.f32 %v960, %v1366
        %v1368 = vpop.f32.mrb[0].mxu0
        %1369 = vmatprep.mubr.bf16.mxu0 %v1255
        %1370 = vmatmul.mubr.bf16.gmra.mrb[0].mxu0 %v1145
        %v1371 = vpop.f32.mrb[0].mxu0
        %v1372 = vadd.f32 %v965, %v1371
        %v1373 = vpop.f32.mrb[0].mxu0
        %v1374 = vpop.f32.mrb[0].mxu0
        %v1375 = vadd.f32 %v968, %v1374
        %v1376 = vpop.f32.mrb[0].mxu0
        %1377 = vmatprep.mubr.bf16.mxu0 %v1258
        %1378 = vmatmul.mubr.bf16.gmra.mrb[0].mxu0 %v1147
        %v1379 = vpop.f32.mrb[0].mxu0
        %v1380 = vadd.f32 %v973, %v1379
        %v1381 = vpop.f32.mrb[0].mxu0
        %v1382 = vpop.f32.mrb[0].mxu0
        %v1383 = vadd.f32 %v976, %v1382
        %v1384 = vpop.f32.mrb[0].mxu0
        %1385 = vmatprep.mubr.bf16.mxu0 %v1261
        %1386 = vmatmul.mubr.bf16.gmra.mrb[0].mxu0 %v1149
        %v1387 = vpop.f32.mrb[0].mxu0
        %v1388 = vadd.f32 %v981, %v1387
        %v1389 = vpop.f32.mrb[0].mxu0
        %v1390 = vpop.f32.mrb[0].mxu0
        %v1391 = vadd.f32 %v984, %v1390
        %v1392 = vpop.f32.mrb[0].mxu0
        %1393 = vmatprep.mubr.bf16.mxu0 %v1264
        %1394 = vmatmul.mubr.bf16.gmra.mrb[0].mxu0 %v1151
        %v1395 = vpop.f32.mrb[0].mxu0
        %v1396 = vadd.f32 %v989, %v1395
        %v1397 = vpop.f32.mrb[0].mxu0
        %v1398 = vpop.f32.mrb[0].mxu0
        %v1399 = vadd.f32 %v992, %v1398
        %v1400 = vpop.f32.mrb[0].mxu0
        %1401 = vmatprep.mubr.bf16.mxu0 %v1267
        %1402 = vmatmul.mubr.bf16.gmra.mrb[0].mxu0 %v1153
        %v1403 = vpop.f32.mrb[0].mxu0
        %v1404 = vadd.f32 %v997, %v1403
        %v1405 = vpop.f32.mrb[0].mxu0
        %v1406 = vpop.f32.mrb[0].mxu0
        %v1407 = vadd.f32 %v1000, %v1406
        %v1408 = vpop.f32.mrb[0].mxu0
        %1409 = vmatprep.mubr.bf16.mxu0 %v1270
        %1410 = vmatmul.mubr.bf16.gmra.mrb[0].mxu0 %v1155
        %v1411 = vpop.f32.mrb[0].mxu0
        %v1412 = vadd.f32 %v1005, %v1411
        %v1413 = vpop.f32.mrb[0].mxu0
        %v1414 = vpop.f32.mrb[0].mxu0
        %v1415 = vadd.f32 %v1008, %v1414
        %v1416 = vpop.f32.mrb[0].mxu0
        %1417 = vmatprep.mubr.bf16.mxu0 %v1273
        %1418 = vmatmul.mubr.bf16.gmra.mrb[0].mxu0 %v1157
        %v1419 = vpop.f32.mrb[0].mxu0
        %v1420 = vadd.f32 %v1013, %v1419
        %v1421 = vpop.f32.mrb[0].mxu0
        %v1422 = vpop.f32.mrb[0].mxu0
        %v1423 = vadd.f32 %v1016, %v1422
        %v1424 = vpop.f32.mrb[0].mxu0
        %1425 = vmatprep.mubr.bf16.mxu0 %v1276
        %1426 = vmatmul.mubr.bf16.gmra.mrb[0].mxu0 %v1159
        %v1427 = vpop.f32.mrb[0].mxu0
        %v1428 = vadd.f32 %v1021, %v1427
        %v1429 = vpop.f32.mrb[0].mxu0
        %v1430 = vpop.f32.mrb[0].mxu0
        %v1431 = vadd.f32 %v1024, %v1430
        %v1432 = vpop.f32.mrb[0].mxu0
        %1433 = vmatprep.mubr.bf16.mxu0 %v1279
        %1434 = vmatmul.mubr.bf16.gmra.mrb[0].mxu0 %v1161
        %v1435 = vpop.f32.mrb[0].mxu0
        %v1436 = vadd.f32 %v1029, %v1435
        %v1437 = vpop.f32.mrb[0].mxu0
        %v1438 = vpop.f32.mrb[0].mxu0
        %v1439 = vadd.f32 %v1032, %v1438
        %v1440 = vpop.f32.mrb[0].mxu0
        %1441 = vdwg.mxu0
        %vm1458 = vcmask 1042432
        %vm1459 = vcmask 1046532
        %vm1460 = vmor %vm1458, %vm1459
        %v1461 = vrot.slane %v187, 5
        %v1462 = vrot.slane %v1461, 4
        %v1463 = vrot.slane %v188, 5
        %v1464 = vsel %vm1460, %v1462, %v1463
        %v1465 = vrot.slane %v1463, 4
        %v1466 = vrot.slane %v189, 5
        %v1467 = vsel %vm1460, %v1465, %v1466
        %v1468 = vrot.slane %v190, 5
        %v1469 = vrot.slane %v1468, 4
        %v1470 = vrot.slane %v191, 5
        %v1471 = vsel %vm1460, %v1469, %v1470
        %v1472 = vrot.slane %v1470, 4
        %v1473 = vrot.slane %v192, 5
        %v1474 = vsel %vm1460, %v1472, %v1473
        %v1475 = vrot.slane %v193, 5
        %v1476 = vrot.slane %v1475, 4
        %v1477 = vrot.slane %v194, 5
        %v1478 = vsel %vm1460, %v1476, %v1477
        %v1479 = vrot.slane %v1477, 4
        %v1480 = vrot.slane %v195, 5
        %v1481 = vsel %vm1460, %v1479, %v1480
        %v1482 = vrot.slane %v196, 5
        %v1483 = vrot.slane %v1482, 4
        %v1484 = vrot.slane %v197, 5
        %v1485 = vsel %vm1460, %v1483, %v1484
        %v1486 = vrot.slane %v1484, 4
        %v1487 = vrot.slane %v198, 5
        %v1488 = vsel %vm1460, %v1486, %v1487
        %v1489 = vrot.slane %v199, 5
        %v1490 = vrot.slane %v1489, 4
        %v1491 = vrot.slane %v200, 5
        %v1492 = vsel %vm1460, %v1490, %v1491
        %v1493 = vrot.slane %v1491, 4
        %v1494 = vrot.slane %v201, 5
        %v1495 = vsel %vm1460, %v1493, %v1494
        %v1496 = vrot.slane %v202, 5
        %v1497 = vrot.slane %v1496, 4
        %v1498 = vrot.slane %v203, 5
        %v1499 = vsel %vm1460, %v1497, %v1498
        %v1500 = vrot.slane %v1498, 4
        %v1501 = vrot.slane %v204, 5
        %v1502 = vsel %vm1460, %v1500, %v1501
        %v1503 = vrot.slane %v205, 5
        %v1504 = vrot.slane %v1503, 4
        %v1505 = vrot.slane %v206, 5
        %v1506 = vsel %vm1460, %v1504, %v1505
        %v1507 = vrot.slane %v1505, 4
        %v1508 = vrot.slane %v207, 5
        %v1509 = vsel %vm1460, %v1507, %v1508
        %v1510 = vrot.slane %v208, 5
        %v1511 = vrot.slane %v1510, 4
        %v1512 = vrot.slane %v209, 5
        %v1513 = vsel %vm1460, %v1511, %v1512
        %v1514 = vrot.slane %v1512, 4
        %v1515 = vrot.slane %v210, 5
        %v1516 = vsel %vm1460, %v1514, %v1515
        %v1517 = vrot.slane %v211, 5
        %v1518 = vrot.slane %v1517, 4
        %v1519 = vrot.slane %v212, 5
        %v1520 = vsel %vm1460, %v1518, %v1519
        %v1521 = vrot.slane %v1519, 4
        %v1522 = vrot.slane %v213, 5
        %v1523 = vsel %vm1460, %v1521, %v1522
        %v1524 = vrot.slane %v214, 5
        %v1525 = vrot.slane %v1524, 4
        %v1526 = vrot.slane %v215, 5
        %v1527 = vsel %vm1460, %v1525, %v1526
        %v1528 = vrot.slane %v1526, 4
        %v1529 = vrot.slane %v216, 5
        %v1530 = vsel %vm1460, %v1528, %v1529
        %v1531 = vrot.slane %v217, 5
        %v1532 = vrot.slane %v1531, 4
        %v1533 = vrot.slane %v218, 5
        %v1534 = vsel %vm1460, %v1532, %v1533
        %v1535 = vrot.slane %v1533, 4
        %v1536 = vrot.slane %v219, 5
        %v1537 = vsel %vm1460, %v1535, %v1536
        %v1538 = vrot.slane %v220, 5
        %v1539 = vrot.slane %v1538, 4
        %v1540 = vrot.slane %v221, 5
        %v1541 = vsel %vm1460, %v1539, %v1540
        %v1542 = vrot.slane %v1540, 4
        %v1543 = vrot.slane %v222, 5
        %v1544 = vsel %vm1460, %v1542, %v1543
        %v1545 = vrot.slane %v223, 5
        %v1546 = vrot.slane %v1545, 4
        %v1547 = vrot.slane %v224, 5
        %v1548 = vsel %vm1460, %v1546, %v1547
        %v1549 = vrot.slane %v1547, 4
        %v1550 = vrot.slane %v225, 5
        %v1551 = vsel %vm1460, %v1549, %v1550
        %v1552 = vrot.slane %v226, 5
        %v1553 = vrot.slane %v1552, 4
        %v1554 = vrot.slane %v227, 5
        %v1555 = vsel %vm1460, %v1553, %v1554
        %v1556 = vrot.slane %v1554, 4
        %v1557 = vrot.slane %v228, 5
        %v1558 = vsel %vm1460, %v1556, %v1557
        %v1559 = vrot.slane %v229, 5
        %v1560 = vrot.slane %v1559, 4
        %v1561 = vrot.slane %v230, 5
        %v1562 = vsel %vm1460, %v1560, %v1561
        %v1563 = vrot.slane %v1561, 4
        %v1564 = vrot.slane %v231, 5
        %v1565 = vsel %vm1460, %v1563, %v1564
        %v1566 = vrot.slane %v232, 5
        %v1567 = vrot.slane %v1566, 4
        %v1568 = vrot.slane %v233, 5
        %v1569 = vsel %vm1460, %v1567, %v1568
        %v1570 = vrot.slane %v1568, 4
        %v1571 = vrot.slane %v234, 5
        %v1572 = vsel %vm1460, %v1570, %v1571
        %s1573 = scalar_lea.vmem %s1, 144
        %v1574 = vld [vmem:[%s1573] sm:$0xf]
        %v1575 = vld [vmem:[%s1573 + $0x4] sm:$0xf]
        %v1576 = vld [vmem:[%s1573 + $0x8] sm:$0xf]
        %v1577 = vld [vmem:[%s1573 + $0xc] sm:$0xf]
        %v1578 = vld [vmem:[%s1573 + $0x10] sm:$0xf]
        %v1579 = vld [vmem:[%s1573 + $0x14] sm:$0xf]
        %v1580 = vld [vmem:[%s1573 + $0x18] sm:$0xf]
        %v1581 = vld [vmem:[%s1573 + $0x1c] sm:$0xf]
        %v1582 = vld [vmem:[%s1573 + $0x20] sm:$0xf]
        %v1583 = vld [vmem:[%s1573 + $0x24] sm:$0xf]
        %v1584 = vld [vmem:[%s1573 + $0x28] sm:$0xf]
        %v1585 = vld [vmem:[%s1573 + $0x2c] sm:$0xf]
        %v1586 = vld [vmem:[%s1573 + $0x30] sm:$0xf]
        %v1587 = vld [vmem:[%s1573 + $0x34] sm:$0xf]
        %v1588 = vld [vmem:[%s1573 + $0x38] sm:$0xf]
        %v1589 = vld [vmem:[%s1573 + $0x3c] sm:$0xf]
        %v1590 = vld [vmem:[%s1573 + $0x40] sm:$0xf]
        %v1591 = vld [vmem:[%s1573 + $0x44] sm:$0xf]
        %v1592 = vunpack.c.l.b16 %v1464
        %v1593 = vunpack.c.h.b16 %v1464
        %v1594 = vunpack.c.l.b16 %v1467
        %v1595 = vunpack.c.h.b16 %v1467
        %v1596 = vunpack.c.l.b16 %v1471
        %v1597 = vunpack.c.h.b16 %v1471
        %v1598 = vunpack.c.l.b16 %v1474
        %v1599 = vunpack.c.h.b16 %v1474
        %v1600 = vunpack.c.l.b16 %v1478
        %v1601 = vunpack.c.h.b16 %v1478
        %v1602 = vunpack.c.l.b16 %v1481
        %v1603 = vunpack.c.h.b16 %v1481
        %v1604 = vunpack.c.l.b16 %v1485
        %v1605 = vunpack.c.h.b16 %v1485
        %v1606 = vunpack.c.l.b16 %v1488
        %v1607 = vunpack.c.h.b16 %v1488
        %v1608 = vunpack.c.l.b16 %v1492
        %v1609 = vunpack.c.h.b16 %v1492
        %v1610 = vunpack.c.l.b16 %v1495
        %v1611 = vunpack.c.h.b16 %v1495
        %v1612 = vunpack.c.l.b16 %v1499
        %v1613 = vunpack.c.h.b16 %v1499
        %v1614 = vunpack.c.l.b16 %v1502
        %v1615 = vunpack.c.h.b16 %v1502
        %v1616 = vunpack.c.l.b16 %v1506
        %v1617 = vunpack.c.h.b16 %v1506
        %v1618 = vunpack.c.l.b16 %v1509
        %v1619 = vunpack.c.h.b16 %v1509
        %v1620 = vunpack.c.l.b16 %v1513
        %v1621 = vunpack.c.h.b16 %v1513
        %v1622 = vunpack.c.l.b16 %v1516
        %v1623 = vunpack.c.h.b16 %v1516
        %v1624 = vunpack.c.l.b16 %v1520
        %v1625 = vunpack.c.h.b16 %v1520
        %v1626 = vunpack.c.l.b16 %v1523
        %v1627 = vunpack.c.h.b16 %v1523
        %v1628 = vunpack.c.l.b16 %v1527
        %v1629 = vunpack.c.h.b16 %v1527
        %v1630 = vunpack.c.l.b16 %v1530
        %v1631 = vunpack.c.h.b16 %v1530
        %v1632 = vunpack.c.l.b16 %v1534
        %v1633 = vunpack.c.h.b16 %v1534
        %v1634 = vunpack.c.l.b16 %v1537
        %v1635 = vunpack.c.h.b16 %v1537
        %v1636 = vunpack.c.l.b16 %v1541
        %v1637 = vunpack.c.h.b16 %v1541
        %v1638 = vunpack.c.l.b16 %v1544
        %v1639 = vunpack.c.h.b16 %v1544
        %v1640 = vunpack.c.l.b16 %v1548
        %v1641 = vunpack.c.h.b16 %v1548
        %v1642 = vunpack.c.l.b16 %v1551
        %v1643 = vunpack.c.h.b16 %v1551
        %v1644 = vunpack.c.l.b16 %v1555
        %v1645 = vunpack.c.h.b16 %v1555
        %v1646 = vunpack.c.l.b16 %v1558
        %v1647 = vunpack.c.h.b16 %v1558
        %v1648 = vunpack.c.l.b16 %v1562
        %v1649 = vunpack.c.h.b16 %v1562
        %v1650 = vunpack.c.l.b16 %v1565
        %v1651 = vunpack.c.h.b16 %v1565
        %v1652 = vunpack.c.l.b16 %v1569
        %v1653 = vunpack.c.h.b16 %v1569
        %v1654 = vunpack.c.l.b16 %v1572
        %v1655 = vunpack.c.h.b16 %v1572
        %v1656 = vpack.c.b16 %v1594, %v1592
        %v1657 = vpack.c.b16 %v1595, %v1593
        %v1658 = vpack.c.b16 %v1598, %v1596
        %v1659 = vpack.c.b16 %v1599, %v1597
        %v1660 = vpack.c.b16 %v1602, %v1600
        %v1661 = vpack.c.b16 %v1603, %v1601
        %v1662 = vpack.c.b16 %v1606, %v1604
        %v1663 = vpack.c.b16 %v1607, %v1605
        %v1664 = vpack.c.b16 %v1610, %v1608
        %v1665 = vpack.c.b16 %v1611, %v1609
        %v1666 = vpack.c.b16 %v1614, %v1612
        %v1667 = vpack.c.b16 %v1615, %v1613
        %v1668 = vpack.c.b16 %v1618, %v1616
        %v1669 = vpack.c.b16 %v1619, %v1617
        %v1670 = vpack.c.b16 %v1622, %v1620
        %v1671 = vpack.c.b16 %v1623, %v1621
        %v1672 = vpack.c.b16 %v1626, %v1624
        %v1673 = vpack.c.b16 %v1627, %v1625
        %v1674 = vpack.c.b16 %v1630, %v1628
        %v1675 = vpack.c.b16 %v1631, %v1629
        %v1676 = vpack.c.b16 %v1634, %v1632
        %v1677 = vpack.c.b16 %v1635, %v1633
        %v1678 = vpack.c.b16 %v1638, %v1636
        %v1679 = vpack.c.b16 %v1639, %v1637
        %v1680 = vpack.c.b16 %v1642, %v1640
        %v1681 = vpack.c.b16 %v1643, %v1641
        %v1682 = vpack.c.b16 %v1646, %v1644
        %v1683 = vpack.c.b16 %v1647, %v1645
        %v1684 = vpack.c.b16 %v1650, %v1648
        %v1685 = vpack.c.b16 %v1651, %v1649
        %v1686 = vpack.c.b16 %v1654, %v1652
        %v1687 = vpack.c.b16 %v1655, %v1653
        %v1722 = vunpack.c.l.b16 %v1574
        %v1723 = vunpack.c.l.b16 %v1575
        %v1724 = vunpack.c.l.b16 %v1576
        %v1725 = vunpack.c.l.b16 %v1577
        %v1726 = vunpack.c.l.b16 %v1578
        %v1727 = vunpack.c.l.b16 %v1579
        %v1728 = vunpack.c.l.b16 %v1580
        %v1729 = vunpack.c.l.b16 %v1581
        %v1730 = vunpack.c.l.b16 %v1582
        %v1731 = vunpack.c.l.b16 %v1583
        %v1732 = vunpack.c.l.b16 %v1584
        %v1733 = vunpack.c.l.b16 %v1585
        %v1734 = vunpack.c.l.b16 %v1586
        %v1735 = vunpack.c.l.b16 %v1587
        %v1736 = vunpack.c.l.b16 %v1588
        %v1737 = vunpack.c.l.b16 %v1589
        %v1738 = vunpack.c.l.b16 %v1590
        %v1739 = vunpack.c.l.b16 %v1591
        %v1740 = vpack.c.b16 %v1723, %v1722
        %v1741 = vpack.c.b16 %v1725, %v1724
        %v1742 = vpack.c.b16 %v1727, %v1726
        %v1743 = vpack.c.b16 %v1729, %v1728
        %v1744 = vpack.c.b16 %v1731, %v1730
        %v1745 = vpack.c.b16 %v1733, %v1732
        %v1746 = vpack.c.b16 %v1735, %v1734
        %v1747 = vpack.c.b16 %v1737, %v1736
        %v1748 = vpack.c.b16 %v1739, %v1738
        %v1759 = vsel %vm825, %v1657, 0
        %v1762 = vsel %vm825, %v1659, 0
        %v1765 = vsel %vm825, %v1661, 0
        %v1768 = vsel %vm825, %v1663, 0
        %v1771 = vsel %vm825, %v1665, 0
        %v1774 = vsel %vm825, %v1667, 0
        %v1777 = vsel %vm825, %v1669, 0
        %v1780 = vsel %vm825, %v1671, 0
        %v1783 = vsel %vm825, %v1673, 0
        %v1786 = vsel %vm825, %v1675, 0
        %v1789 = vsel %vm825, %v1677, 0
        %v1792 = vsel %vm825, %v1679, 0
        %v1795 = vsel %vm825, %v1681, 0
        %v1798 = vsel %vm825, %v1683, 0
        %v1801 = vsel %vm825, %v1685, 0
        %v1804 = vsel %vm825, %v1687, 0
        %1806 = vmatprep.subr.bf16.mxu0 0
        %1807 = vmatpush1.bf16.msra.mxu0 %v1740
        %1808 = vmatprep.subr.bf16.mxu0 0
        %1809 = vmatpush1.bf16.msra.mxu0 %v1741
        %1810 = vmatprep.subr.bf16.mxu0 0
        %1811 = vmatpush1.bf16.msra.mxu0 %v1742
        %1812 = vmatprep.subr.bf16.mxu0 0
        %1813 = vmatpush1.bf16.msra.mxu0 %v1743
        %1814 = vmatprep.subr.bf16.mxu0 0
        %1815 = vmatpush1.bf16.msra.mxu0 %v1744
        %1816 = vmatprep.subr.bf16.mxu0 0
        %1817 = vmatpush1.bf16.msra.mxu0 %v1745
        %1818 = vmatprep.subr.bf16.mxu0 0
        %1819 = vmatpush1.bf16.msra.mxu0 %v1746
        %1820 = vmatprep.subr.bf16.mxu0 0
        %1821 = vmatpush1.bf16.msra.mxu0 %v1747
        %1822 = vmatprep.subr.bf16.mxu0 0
        %1823 = vmatpush1.bf16.msra.mxu0 %v1748
        %1824 = vmatprep.subr.bf16.mxu0 0
        %1825 = vmatpush1.bf16.msra.mxu0 0
        %1826 = vmatprep.subr.bf16.mxu0 0
        %1827 = vmatpush1.bf16.msra.mxu0 0
        %1828 = vmatprep.subr.bf16.mxu0 0
        %1829 = vmatpush1.bf16.msra.mxu0 0
        %1830 = vmatprep.subr.bf16.mxu0 0
        %1831 = vmatpush1.bf16.msra.mxu0 0
        %1832 = vmatprep.subr.bf16.mxu0 0
        %1833 = vmatpush1.bf16.msra.mxu0 0
        %1834 = vmatprep.subr.bf16.mxu0 0
        %1835 = vmatpush1.bf16.msra.mxu0 0
        %1836 = vmatprep.subr.bf16.mxu0 0
        %1837 = vmatpush1.bf16.msra.mxu0 0
        %1838 = vmatprep.mubr.bf16.mxu0 %v1759
        %1839 = vmatmul.mubr.bf16.gmra.mrb[0].mxu0 %v1656
        %v1840 = vpop.f32.mrb[0].mxu0
        %v1841 = vadd.f32 0.0, %v1840
        %v1842 = vpop.f32.mrb[0].mxu0
        %v1843 = vpop.f32.mrb[0].mxu0
        %v1844 = vadd.f32 0.0, %v1843
        %v1845 = vpop.f32.mrb[0].mxu0
        %1846 = vmatprep.mubr.bf16.mxu0 %v1762
        %1847 = vmatmul.mubr.bf16.gmra.mrb[0].mxu0 %v1658
        %v1848 = vpop.f32.mrb[0].mxu0
        %v1849 = vadd.f32 0.0, %v1848
        %v1850 = vpop.f32.mrb[0].mxu0
        %v1851 = vpop.f32.mrb[0].mxu0
        %v1852 = vadd.f32 0.0, %v1851
        %v1853 = vpop.f32.mrb[0].mxu0
        %1854 = vmatprep.mubr.bf16.mxu0 %v1765
        %1855 = vmatmul.mubr.bf16.gmra.mrb[0].mxu0 %v1660
        %v1856 = vpop.f32.mrb[0].mxu0
        %v1857 = vadd.f32 0.0, %v1856
        %v1858 = vpop.f32.mrb[0].mxu0
        %v1859 = vpop.f32.mrb[0].mxu0
        %v1860 = vadd.f32 0.0, %v1859
        %v1861 = vpop.f32.mrb[0].mxu0
        %1862 = vmatprep.mubr.bf16.mxu0 %v1768
        %1863 = vmatmul.mubr.bf16.gmra.mrb[0].mxu0 %v1662
        %v1864 = vpop.f32.mrb[0].mxu0
        %v1865 = vadd.f32 0.0, %v1864
        %v1866 = vpop.f32.mrb[0].mxu0
        %v1867 = vpop.f32.mrb[0].mxu0
        %v1868 = vadd.f32 0.0, %v1867
        %v1869 = vpop.f32.mrb[0].mxu0
        %1870 = vmatprep.mubr.bf16.mxu0 %v1771
        %1871 = vmatmul.mubr.bf16.gmra.mrb[0].mxu0 %v1664
        %v1872 = vpop.f32.mrb[0].mxu0
        %v1873 = vadd.f32 0.0, %v1872
        %v1874 = vpop.f32.mrb[0].mxu0
        %v1875 = vpop.f32.mrb[0].mxu0
        %v1876 = vadd.f32 0.0, %v1875
        %v1877 = vpop.f32.mrb[0].mxu0
        %1878 = vmatprep.mubr.bf16.mxu0 %v1774
        %1879 = vmatmul.mubr.bf16.gmra.mrb[0].mxu0 %v1666
        %v1880 = vpop.f32.mrb[0].mxu0
        %v1881 = vadd.f32 0.0, %v1880
        %v1882 = vpop.f32.mrb[0].mxu0
        %v1883 = vpop.f32.mrb[0].mxu0
        %v1884 = vadd.f32 0.0, %v1883
        %v1885 = vpop.f32.mrb[0].mxu0
        %1886 = vmatprep.mubr.bf16.mxu0 %v1777
        %1887 = vmatmul.mubr.bf16.gmra.mrb[0].mxu0 %v1668
        %v1888 = vpop.f32.mrb[0].mxu0
        %v1889 = vadd.f32 0.0, %v1888
        %v1890 = vpop.f32.mrb[0].mxu0
        %v1891 = vpop.f32.mrb[0].mxu0
        %v1892 = vadd.f32 0.0, %v1891
        %v1893 = vpop.f32.mrb[0].mxu0
        %1894 = vmatprep.mubr.bf16.mxu0 %v1780
        %1895 = vmatmul.mubr.bf16.gmra.mrb[0].mxu0 %v1670
        %v1896 = vpop.f32.mrb[0].mxu0
        %v1897 = vadd.f32 0.0, %v1896
        %v1898 = vpop.f32.mrb[0].mxu0
        %v1899 = vpop.f32.mrb[0].mxu0
        %v1900 = vadd.f32 0.0, %v1899
        %v1901 = vpop.f32.mrb[0].mxu0
        %1902 = vmatprep.mubr.bf16.mxu0 %v1783
        %1903 = vmatmul.mubr.bf16.gmra.mrb[0].mxu0 %v1672
        %v1904 = vpop.f32.mrb[0].mxu0
        %v1905 = vadd.f32 0.0, %v1904
        %v1906 = vpop.f32.mrb[0].mxu0
        %v1907 = vpop.f32.mrb[0].mxu0
        %v1908 = vadd.f32 0.0, %v1907
        %v1909 = vpop.f32.mrb[0].mxu0
        %1910 = vmatprep.mubr.bf16.mxu0 %v1786
        %1911 = vmatmul.mubr.bf16.gmra.mrb[0].mxu0 %v1674
        %v1912 = vpop.f32.mrb[0].mxu0
        %v1913 = vadd.f32 0.0, %v1912
        %v1914 = vpop.f32.mrb[0].mxu0
        %v1915 = vpop.f32.mrb[0].mxu0
        %v1916 = vadd.f32 0.0, %v1915
        %v1917 = vpop.f32.mrb[0].mxu0
        %1918 = vmatprep.mubr.bf16.mxu0 %v1789
        %1919 = vmatmul.mubr.bf16.gmra.mrb[0].mxu0 %v1676
        %v1920 = vpop.f32.mrb[0].mxu0
        %v1921 = vadd.f32 0.0, %v1920
        %v1922 = vpop.f32.mrb[0].mxu0
        %v1923 = vpop.f32.mrb[0].mxu0
        %v1924 = vadd.f32 0.0, %v1923
        %v1925 = vpop.f32.mrb[0].mxu0
        %1926 = vmatprep.mubr.bf16.mxu0 %v1792
        %1927 = vmatmul.mubr.bf16.gmra.mrb[0].mxu0 %v1678
        %v1928 = vpop.f32.mrb[0].mxu0
        %v1929 = vadd.f32 0.0, %v1928
        %v1930 = vpop.f32.mrb[0].mxu0
        %v1931 = vpop.f32.mrb[0].mxu0
        %v1932 = vadd.f32 0.0, %v1931
        %v1933 = vpop.f32.mrb[0].mxu0
        %1934 = vmatprep.mubr.bf16.mxu0 %v1795
        %1935 = vmatmul.mubr.bf16.gmra.mrb[0].mxu0 %v1680
        %v1936 = vpop.f32.mrb[0].mxu0
        %v1937 = vadd.f32 0.0, %v1936
        %v1938 = vpop.f32.mrb[0].mxu0
        %v1939 = vpop.f32.mrb[0].mxu0
        %v1940 = vadd.f32 0.0, %v1939
        %v1941 = vpop.f32.mrb[0].mxu0
        %1942 = vmatprep.mubr.bf16.mxu0 %v1798
        %1943 = vmatmul.mubr.bf16.gmra.mrb[0].mxu0 %v1682
        %v1944 = vpop.f32.mrb[0].mxu0
        %v1945 = vadd.f32 0.0, %v1944
        %v1946 = vpop.f32.mrb[0].mxu0
        %v1947 = vpop.f32.mrb[0].mxu0
        %v1948 = vadd.f32 0.0, %v1947
        %v1949 = vpop.f32.mrb[0].mxu0
        %1950 = vmatprep.mubr.bf16.mxu0 %v1801
        %1951 = vmatmul.mubr.bf16.gmra.mrb[0].mxu0 %v1684
        %v1952 = vpop.f32.mrb[0].mxu0
        %v1953 = vadd.f32 0.0, %v1952
        %v1954 = vpop.f32.mrb[0].mxu0
        %v1955 = vpop.f32.mrb[0].mxu0
        %v1956 = vadd.f32 0.0, %v1955
        %v1957 = vpop.f32.mrb[0].mxu0
        %1958 = vmatprep.mubr.bf16.mxu0 %v1804
        %1959 = vmatmul.mubr.bf16.gmra.mrb[0].mxu0 %v1686
        %v1960 = vpop.f32.mrb[0].mxu0
        %v1961 = vadd.f32 0.0, %v1960
        %v1962 = vpop.f32.mrb[0].mxu0
        %v1963 = vpop.f32.mrb[0].mxu0
        %v1964 = vadd.f32 0.0, %v1963
        %v1965 = vpop.f32.mrb[0].mxu0
        %1966 = vdwg.mxu0
        %v1967 = vadd.f32 %v1316, %v1841
        %v1968 = vadd.f32 %v1319, %v1844
        %v1969 = vadd.f32 %v1324, %v1849
        %v1970 = vadd.f32 %v1327, %v1852
        %v1971 = vadd.f32 %v1332, %v1857
        %v1972 = vadd.f32 %v1335, %v1860
        %v1973 = vadd.f32 %v1340, %v1865
        %v1974 = vadd.f32 %v1343, %v1868
        %v1975 = vadd.f32 %v1348, %v1873
        %v1976 = vadd.f32 %v1351, %v1876
        %v1977 = vadd.f32 %v1356, %v1881
        %v1978 = vadd.f32 %v1359, %v1884
        %v1979 = vadd.f32 %v1364, %v1889
        %v1980 = vadd.f32 %v1367, %v1892
        %v1981 = vadd.f32 %v1372, %v1897
        %v1982 = vadd.f32 %v1375, %v1900
        %v1983 = vadd.f32 %v1380, %v1905
        %v1984 = vadd.f32 %v1383, %v1908
        %v1985 = vadd.f32 %v1388, %v1913
        %v1986 = vadd.f32 %v1391, %v1916
        %v1987 = vadd.f32 %v1396, %v1921
        %v1988 = vadd.f32 %v1399, %v1924
        %v1989 = vadd.f32 %v1404, %v1929
        %v1990 = vadd.f32 %v1407, %v1932
        %v1991 = vadd.f32 %v1412, %v1937
        %v1992 = vadd.f32 %v1415, %v1940
        %v1993 = vadd.f32 %v1420, %v1945
        %v1994 = vadd.f32 %v1423, %v1948
        %v1995 = vadd.f32 %v1428, %v1953
        %v1996 = vadd.f32 %v1431, %v1956
        %v1997 = vadd.f32 %v1436, %v1961
        %v1998 = vadd.f32 %v1439, %v1964
        %v1999 = vpack.c.bf16 %v1968, %v1967
        %v2000 = vpack.c.bf16 %v1970, %v1969
        %v2001 = vpack.c.bf16 %v1972, %v1971
        %v2002 = vpack.c.bf16 %v1974, %v1973
        %v2003 = vpack.c.bf16 %v1976, %v1975
        %v2004 = vpack.c.bf16 %v1978, %v1977
        %v2005 = vpack.c.bf16 %v1980, %v1979
        %v2006 = vpack.c.bf16 %v1982, %v1981
        %v2007 = vpack.c.bf16 %v1984, %v1983
        %v2008 = vpack.c.bf16 %v1986, %v1985
        %v2009 = vpack.c.bf16 %v1988, %v1987
        %v2010 = vpack.c.bf16 %v1990, %v1989
        %v2011 = vpack.c.bf16 %v1992, %v1991
        %v2012 = vpack.c.bf16 %v1994, %v1993
        %v2013 = vpack.c.bf16 %v1996, %v1995
        %v2014 = vpack.c.bf16 %v1998, %v1997
        %v2031 = vunpack.c.l.b16 %v1999
        %v2032 = vunpack.c.h.b16 %v1999
        %v2033 = vunpack.c.l.b16 %v2000
        %v2034 = vunpack.c.h.b16 %v2000
        %v2035 = vunpack.c.l.b16 %v2001
        %v2036 = vunpack.c.h.b16 %v2001
        %v2037 = vunpack.c.l.b16 %v2002
        %v2038 = vunpack.c.h.b16 %v2002
        %v2039 = vunpack.c.l.b16 %v2003
        %v2040 = vunpack.c.h.b16 %v2003
        %v2041 = vunpack.c.l.b16 %v2004
        %v2042 = vunpack.c.h.b16 %v2004
        %v2043 = vunpack.c.l.b16 %v2005
        %v2044 = vunpack.c.h.b16 %v2005
        %v2045 = vunpack.c.l.b16 %v2006
        %v2046 = vunpack.c.h.b16 %v2006
        %v2047 = vunpack.c.l.b16 %v2007
        %v2048 = vunpack.c.h.b16 %v2007
        %v2049 = vunpack.c.l.b16 %v2008
        %v2050 = vunpack.c.h.b16 %v2008
        %v2051 = vunpack.c.l.b16 %v2009
        %v2052 = vunpack.c.h.b16 %v2009
        %v2053 = vunpack.c.l.b16 %v2010
        %v2054 = vunpack.c.h.b16 %v2010
        %v2055 = vunpack.c.l.b16 %v2011
        %v2056 = vunpack.c.h.b16 %v2011
        %v2057 = vunpack.c.l.b16 %v2012
        %v2058 = vunpack.c.h.b16 %v2012
        %v2059 = vunpack.c.l.b16 %v2013
        %v2060 = vunpack.c.h.b16 %v2013
        %v2061 = vunpack.c.l.b16 %v2014
        %v2062 = vunpack.c.h.b16 %v2014
        %v2063 = vpack.c.b16 %v2031, %v2031
        %v2064 = vpack.c.b16 %v2032, %v2032
        %v2065 = vpack.c.b16 %v2033, %v2033
        %v2066 = vpack.c.b16 %v2034, %v2034
        %v2067 = vpack.c.b16 %v2035, %v2035
        %v2068 = vpack.c.b16 %v2036, %v2036
        %v2069 = vpack.c.b16 %v2037, %v2037
        %v2070 = vpack.c.b16 %v2038, %v2038
        %v2071 = vpack.c.b16 %v2039, %v2039
        %v2072 = vpack.c.b16 %v2040, %v2040
        %v2073 = vpack.c.b16 %v2041, %v2041
        %v2074 = vpack.c.b16 %v2042, %v2042
        %v2075 = vpack.c.b16 %v2043, %v2043
        %v2076 = vpack.c.b16 %v2044, %v2044
        %v2077 = vpack.c.b16 %v2045, %v2045
        %v2078 = vpack.c.b16 %v2046, %v2046
        %v2079 = vpack.c.b16 %v2047, %v2047
        %v2080 = vpack.c.b16 %v2048, %v2048
        %v2081 = vpack.c.b16 %v2049, %v2049
        %v2082 = vpack.c.b16 %v2050, %v2050
        %v2083 = vpack.c.b16 %v2051, %v2051
        %v2084 = vpack.c.b16 %v2052, %v2052
        %v2085 = vpack.c.b16 %v2053, %v2053
        %v2086 = vpack.c.b16 %v2054, %v2054
        %v2087 = vpack.c.b16 %v2055, %v2055
        %v2088 = vpack.c.b16 %v2056, %v2056
        %v2089 = vpack.c.b16 %v2057, %v2057
        %v2090 = vpack.c.b16 %v2058, %v2058
        %v2091 = vpack.c.b16 %v2059, %v2059
        %v2092 = vpack.c.b16 %v2060, %v2060
        %v2093 = vpack.c.b16 %v2061, %v2061
        %v2094 = vpack.c.b16 %v2062, %v2062
        %2127 = vst [vmem:[%s170] sm:$0xf] %v2063
        %2128 = vst [vmem:[%s170 + $0x4] sm:$0xf] %v2064
        %2129 = vst [vmem:[%s170 + $0x8] sm:$0xf] %v2065
        %2130 = vst [vmem:[%s170 + $0xc] sm:$0xf] %v2066
        %2131 = vst [vmem:[%s170 + $0x10] sm:$0xf] %v2067
        %2132 = vst [vmem:[%s170 + $0x14] sm:$0xf] %v2068
        %2133 = vst [vmem:[%s170 + $0x18] sm:$0xf] %v2069
        %2134 = vst [vmem:[%s170 + $0x1c] sm:$0xf] %v2070
        %2135 = vst [vmem:[%s170 + $0x20] sm:$0xf] %v2071
        %2136 = vst [vmem:[%s170 + $0x24] sm:$0xf] %v2072
        %2137 = vst [vmem:[%s170 + $0x28] sm:$0xf] %v2073
        %2138 = vst [vmem:[%s170 + $0x2c] sm:$0xf] %v2074
        %2139 = vst [vmem:[%s170 + $0x30] sm:$0xf] %v2075
        %2140 = vst [vmem:[%s170 + $0x34] sm:$0xf] %v2076
        %2141 = vst [vmem:[%s170 + $0x38] sm:$0xf] %v2077
        %2142 = vst [vmem:[%s170 + $0x3c] sm:$0xf] %v2078
        %2143 = vst [vmem:[%s170 + $0x40] sm:$0xf] %v2079
        %2144 = vst [vmem:[%s170 + $0x44] sm:$0xf] %v2080
        %2145 = vst [vmem:[%s170 + $0x48] sm:$0xf] %v2081
        %2146 = vst [vmem:[%s170 + $0x4c] sm:$0xf] %v2082
        %2147 = vst [vmem:[%s170 + $0x50] sm:$0xf] %v2083
        %2148 = vst [vmem:[%s170 + $0x54] sm:$0xf] %v2084
        %2149 = vst [vmem:[%s170 + $0x58] sm:$0xf] %v2085
        %2150 = vst [vmem:[%s170 + $0x5c] sm:$0xf] %v2086
        %2151 = vst [vmem:[%s170 + $0x60] sm:$0xf] %v2087
        %2152 = vst [vmem:[%s170 + $0x64] sm:$0xf] %v2088
        %2153 = vst [vmem:[%s170 + $0x68] sm:$0xf] %v2089
        %2154 = vst [vmem:[%s170 + $0x6c] sm:$0xf] %v2090
        %2155 = vst [vmem:[%s170 + $0x70] sm:$0xf] %v2091
        %2156 = vst [vmem:[%s170 + $0x74] sm:$0xf] %v2092
        %2157 = vst [vmem:[%s170 + $0x78] sm:$0xf] %v2093
        %2158 = vst [vmem:[%s170 + $0x7c] sm:$0xf] %v2094
        %v2159 = vadd.f32 %v1967, %v1968
        %v2160 = vadd.f32 %v2159, %v1969
        %v2161 = vadd.f32 %v2160, %v1970
        %v2162 = vadd.f32 %v2161, %v1971
        %v2163 = vadd.f32 %v2162, %v1972
        %v2164 = vadd.f32 %v2163, %v1973
        %v2165 = vadd.f32 %v2164, %v1974
        %v2166 = vadd.f32 %v2165, %v1975
        %v2167 = vadd.f32 %v2166, %v1976
        %v2168 = vadd.f32 %v2167, %v1977
        %v2169 = vadd.f32 %v2168, %v1978
        %v2170 = vadd.f32 %v2169, %v1979
        %v2171 = vadd.f32 %v2170, %v1980
        %v2172 = vadd.f32 %v2171, %v1981
        %v2173 = vadd.f32 %v2172, %v1982
        %v2174 = vadd.f32 %v2173, %v1983
        %v2175 = vadd.f32 %v2174, %v1984
        %v2176 = vadd.f32 %v2175, %v1985
        %v2177 = vadd.f32 %v2176, %v1986
        %v2178 = vadd.f32 %v2177, %v1987
        %v2179 = vadd.f32 %v2178, %v1988
        %v2180 = vadd.f32 %v2179, %v1989
        %v2181 = vadd.f32 %v2180, %v1990
        %v2182 = vadd.f32 %v2181, %v1991
        %v2183 = vadd.f32 %v2182, %v1992
        %v2184 = vadd.f32 %v2183, %v1993
        %v2185 = vadd.f32 %v2184, %v1994
        %v2186 = vadd.f32 %v2185, %v1995
        %v2187 = vadd.f32 %v2186, %v1996
        %v2188 = vadd.f32 %v2187, %v1997
        %v2189 = vadd.f32 %v2188, %v1998
        %v2190 = vrot.slane %v2189, 4
        %v2191 = vadd.f32 %v2189, %v2190
        %v2192 = vrot.slane %v2191, 2
        %v2193 = vadd.f32 %v2191, %v2192
        %v2194 = vrot.slane %v2193, 1
        %v2195 = vadd.f32 %v2193, %v2194
        %v2196 = vmul.f32 %v1967, %v1967
        %v2197 = vmul.f32 %v1968, %v1968
        %v2198 = vmul.f32 %v1969, %v1969
        %v2199 = vmul.f32 %v1970, %v1970
        %v2200 = vmul.f32 %v1971, %v1971
        %v2201 = vmul.f32 %v1972, %v1972
        %v2202 = vmul.f32 %v1973, %v1973
        %v2203 = vmul.f32 %v1974, %v1974
        %v2204 = vmul.f32 %v1975, %v1975
        %v2205 = vmul.f32 %v1976, %v1976
        %v2206 = vmul.f32 %v1977, %v1977
        %v2207 = vmul.f32 %v1978, %v1978
        %v2208 = vmul.f32 %v1979, %v1979
        %v2209 = vmul.f32 %v1980, %v1980
        %v2210 = vmul.f32 %v1981, %v1981
        %v2211 = vmul.f32 %v1982, %v1982
        %v2212 = vmul.f32 %v1983, %v1983
        %v2213 = vmul.f32 %v1984, %v1984
        %v2214 = vmul.f32 %v1985, %v1985
        %v2215 = vmul.f32 %v1986, %v1986
        %v2216 = vmul.f32 %v1987, %v1987
        %v2217 = vmul.f32 %v1988, %v1988
        %v2218 = vmul.f32 %v1989, %v1989
        %v2219 = vmul.f32 %v1990, %v1990
        %v2220 = vmul.f32 %v1991, %v1991
        %v2221 = vmul.f32 %v1992, %v1992
        %v2222 = vmul.f32 %v1993, %v1993
        %v2223 = vmul.f32 %v1994, %v1994
        %v2224 = vmul.f32 %v1995, %v1995
        %v2225 = vmul.f32 %v1996, %v1996
        %v2226 = vmul.f32 %v1997, %v1997
        %v2227 = vmul.f32 %v1998, %v1998
        %v2228 = vadd.f32 %v2196, %v2197
        %v2229 = vadd.f32 %v2228, %v2198
        %v2230 = vadd.f32 %v2229, %v2199
        %v2231 = vadd.f32 %v2230, %v2200
        %v2232 = vadd.f32 %v2231, %v2201
        %v2233 = vadd.f32 %v2232, %v2202
        %v2234 = vadd.f32 %v2233, %v2203
        %v2235 = vadd.f32 %v2234, %v2204
        %v2236 = vadd.f32 %v2235, %v2205
        %v2237 = vadd.f32 %v2236, %v2206
        %v2238 = vadd.f32 %v2237, %v2207
        %v2239 = vadd.f32 %v2238, %v2208
        %v2240 = vadd.f32 %v2239, %v2209
        %v2241 = vadd.f32 %v2240, %v2210
        %v2242 = vadd.f32 %v2241, %v2211
        %v2243 = vadd.f32 %v2242, %v2212
        %v2244 = vadd.f32 %v2243, %v2213
        %v2245 = vadd.f32 %v2244, %v2214
        %v2246 = vadd.f32 %v2245, %v2215
        %v2247 = vadd.f32 %v2246, %v2216
        %v2248 = vadd.f32 %v2247, %v2217
        %v2249 = vadd.f32 %v2248, %v2218
        %v2250 = vadd.f32 %v2249, %v2219
        %v2251 = vadd.f32 %v2250, %v2220
        %v2252 = vadd.f32 %v2251, %v2221
        %v2253 = vadd.f32 %v2252, %v2222
        %v2254 = vadd.f32 %v2253, %v2223
        %v2255 = vadd.f32 %v2254, %v2224
        %v2256 = vadd.f32 %v2255, %v2225
        %v2257 = vadd.f32 %v2256, %v2226
        %v2258 = vadd.f32 %v2257, %v2227
        %v2259 = vrot.slane %v2258, 4
        %v2260 = vadd.f32 %v2258, %v2259
        %v2261 = vrot.slane %v2260, 2
        %v2262 = vadd.f32 %v2260, %v2261
        %v2263 = vrot.slane %v2262, 1
        %v2264 = vadd.f32 %v2262, %v2263
        %vm2265 = vcmask 1040384
        %v2266 = vsel %vm2265, %v2195, %v2264
        %2267 = vst [vmem:[%s177] sm:$0x3] %v2266
        %s2268 = sand.u32 %s76, 1
        %s2269 = scalar_lea.sflag [#allocation3], %s2268
        %s2270 = sand.u32 %s76, 1
        %s2271 = smul.addr %s2270, 128
        %s2272 = scalar_lea.vmem [#allocation2], %s2271
        %s2273 = sand.u32 %s102, 1
        %s2274 = scalar_lea.sflag [#allocation5], %s2273
        %s2275 = sand.u32 %s102, 1
        %s2276 = smul.addr %s2275, 2
        %s2277 = scalar_lea.vmem [#allocation4], %s2276
        // Predicated region
        $region29: #{tpu_custom_call.1} parent=27 // pred_check
          %p2278 = pneg %p86
        $region30: #{tpu_custom_call.1} parent=27 // pred_check_branch
          %2280 = sbr.rel (%p2278) target = $region32
        $region31: #{tpu_custom_call.1} parent=27 // pred_region
          %s2281 = smul.u32 16, %s21
          %s2283 = ssub.s32 2048, 2048
          %2284 = vsyncadd %s2269, %s2283
          %s2285 = smul.addr %s2281, 2
          %s2286 = smul.addr %s2285, 64
          %s2287 = scalar_lea.hbm %s2, %s2286
          %s2288 = sshll.u32 %s2272, 4
          %s2289 = int_to_ptr.vmem [resolvable:$true] %s2288
          %2294 = dma.vmem_to_hbm [thread:$0]  %s2289, 2048, %s2287, %s2269, 64, 64, 4
        $region32: #{tpu_custom_call.1} parent=27 // pred_fallthru
          _
        // Predicated region
        $region33: #{tpu_custom_call.1} parent=27 // pred_check
          %p2295 = pneg %p112
        $region34: #{tpu_custom_call.1} parent=27 // pred_check_branch
          %2297 = sbr.rel (%p2295) target = $region36
        $region35: #{tpu_custom_call.1} parent=27 // pred_region
          %s2299 = ssub.s32 32, 32
          %2300 = vsyncadd %s2274, %s2299
          %s2301 = smul.addr %s21, 32
          %s2302 = scalar_lea.hbm %s3, %s2301
          %s2304 = sshll.u32 %s2277, 4
          %s2305 = int_to_ptr.vmem [resolvable:$true] %s2304
          %2307 = dma.vmem_to_hbm [thread:$0]  %s2305, 32, %s2302, %s2274
        $region36: #{tpu_custom_call.1} parent=27 // pred_fallthru
          _
      $region28: #{tpu_custom_call.1} parent=5 // pred_fallthru
        _
      %p2308 = scmp.le.s32.totalorder 2, %s16
      // Predicated region
      $region37: #{tpu_custom_call.1} parent=5 // pred_check
        %p2309 = pneg %p2308
      $region38: #{tpu_custom_call.1} parent=5 // pred_check_branch
        %2311 = sbr.rel (%p2309) target = $region40
      $region39: #{tpu_custom_call.1} parent=5 // pred_region
        %s2312 = ssub.s32 %s16, 2
        // Predicated region
        $region41: #{tpu_custom_call.1} parent=39 // pred_check
          %p2313 = pneg %p92
        $region42: #{tpu_custom_call.1} parent=39 // pred_check_branch
          %2315 = sbr.rel (%p2313) target = $region44
        $region43: #{tpu_custom_call.1} parent=39 // pred_region
          %s2316 = sand.u32 %s77, 1
          %s2317 = scalar_lea.sflag [#allocation3], %s2316
          %s2318 = sand.u32 %s77, 1
          %s2319 = smul.addr %s2318, 128
          %s2320 = scalar_lea.vmem [#allocation2], %s2319
          %2321 = dma.done %s2317, 2048
        $region44: #{tpu_custom_call.1} parent=39 // pred_fallthru
          _
        // Predicated region
        $region45: #{tpu_custom_call.1} parent=39 // pred_check
          %p2322 = pneg %p118
        $region46: #{tpu_custom_call.1} parent=39 // pred_check_branch
          %2324 = sbr.rel (%p2322) target = $region48
        $region47: #{tpu_custom_call.1} parent=39 // pred_region
          %s2325 = sand.u32 %s103, 1
          %s2326 = scalar_lea.sflag [#allocation5], %s2325
          %s2327 = sand.u32 %s103, 1
          %s2328 = smul.addr %s2327, 2
          %s2329 = scalar_lea.vmem [#allocation4], %s2328
          %2330 = dma.done %s2326, 32
        $region48: #{tpu_custom_call.1} parent=39 // pred_fallthru
          _
      $region40: #{tpu_custom_call.1} parent=5 // pred_fallthru
        _
    $region6: #{tpu_custom_call.1} parent=1 // loop_footer
      %s20 = sadd.s32 1, %s16
    $region7: #{tpu_custom_call.1} parent=1 // loop_footer_branch
      %15 = sbr.rel target = $region3
    $region8: #{tpu_custom_call.1} parent=1 // loop_exit
      _
    %2331 = vsyncpa [#allocation3], 1
    %s2332 = scalar_lea.sflag [#allocation3], 1
    %2333 = vsyncpa %s2332, 1
    %2334 = vsyncpa [#allocation5], 1
    %s2335 = scalar_lea.sflag [#allocation5], 1
    %2336 = vsyncpa %s2335, 1

</llo_original>
